<compile_context>
chip_gen: v5e
topology: v5e:2x2
jax: 0.10.0
libtpu: 0.0.40
codegen_flags: <defaults>
</compile_context>

<pallas_src>
import numpy as np
import jax
import jax.numpy as jnp
from jax.experimental import pallas as pl
from jax.experimental.pallas import tpu as pltpu


WINDOW_SIZE = 11
SIGMA = 1.5
_C1 = 0.01 ** 2
_C2 = 0.03 ** 2


def gaussian_1d(window_size: int, sigma: float) -> np.ndarray:
    # Same formula as the PyTorch `gaussian()` helper (deterministic init).
    xs = np.arange(window_size)
    g = np.exp(-((xs - window_size // 2) ** 2) / float(2 * sigma ** 2))
    return (g / g.sum()).astype(np.float32)


def _band_matrix(n: int, g: np.ndarray) -> np.ndarray:
    """M[i, r] = g[r - i + pad]; zeros outside the band == zero padding."""
    ws = g.shape[0]
    pad = ws // 2
    m = np.zeros((n, n), dtype=np.float32)
    for i in range(n):
        for d in range(ws):
            r = i + d - pad
            if 0 <= r < n:
                m[i, r] = g[d]
    return m


def _tpu_vmem_capacity_bytes() -> int:
    try:
        return int(pltpu.get_tpu_info().vmem_capacity_bytes)
    except Exception:
        return 64 * 1024 * 1024          # conservative (v7x per-TC VMEM)


def _step_vmem_bytes(P: int, H: int, W: int) -> int:
    """Rough per-grid-step VMEM footprint in bytes (f32 everywhere)."""
    rows = P * H
    # 2 inputs x 2 pipeline buffers (16*rows*W) + ~12 live (rows, W) f32
    # intermediates (x1, x2, 3 products, 5 horizontal-conv results, slack),
    # + double-buffered band matrices + small per-plane temporaries.
    return 64 * rows * W + 16 * (H * H + W * W) + 16 * H * W


def _pick_group_size(n_planes: int, H: int, W: int, budget: int) -> int:
    """Planes per grid step, chosen by a VMEM byte budget (not a row count)."""
    candidates = []
    for p in range(1, n_planes + 1):
        if n_planes % p:
            continue
        rows = p * H
        # Partial blocks must be sublane-aligned; the full-array block is the
        # only layout-legal option when no aligned divisor exists.
        if rows % 8 != 0 and p != n_planes:
            continue
        if _step_vmem_bytes(p, H, W) > budget:
            continue
        candidates.append(p)
    if not candidates:
        # Guarded fallback: never emit a single over-budget whole-array block.
        raise NotImplementedError(
            "SSIM plane group does not fit the VMEM byte budget for this "
            "shape; needs halo'd row/column strip tiling (see TODOs).")
    # Prefer >= 2 grid groups so both TensorCores (v7x megacore) get work.
    multi = [p for p in candidates if n_planes // p >= 2]
    pool = multi if multi else candidates
    return max(pool)


def _make_ssim_kernel(P: int, H: int, W: int, prec):
    def dot(a, b):
        return jnp.dot(a, b, precision=prec,
                       preferred_element_type=jnp.float32)

    def kernel(av_ref, ah_ref, p1_ref, p2_ref, out_ref):
        av = av_ref[...]                  # (H, H) vertical Gaussian band
        ah = ah_ref[...]                  # (W, W) horizontal Gaussian band
        x1 = p1_ref[...]                  # (P*H, W): P planes stacked on rows
        x2 = p2_ref[...]

        # Horizontal conv: five separate dots (no concat staging copy).
        # M = P*H keeps these matmuls sublane-dense; MXU work is unchanged.
        h1 = dot(x1, ah)
        h2 = dot(x2, ah)
        h11 = dot(x1 * x1, ah)
        h22 = dot(x2 * x2, ah)
        h12 = dot(x1 * x2, ah)

        # Vertical conv per plane with the (H, H) band (no block-diagonal
        # zero waste), with the SSIM epilogue fused per plane so conv outputs
        # die immediately and the live set stays O(H*W).
        acc = jnp.zeros((1, W), jnp.float32)
        for p in range(P):
            lo, hi = p * H, (p + 1) * H
            mu1 = dot(av, h1[lo:hi, :])
            mu2 = dot(av, h2[lo:hi, :])
            mu1_sq = mu1 * mu1
            mu2_sq = mu2 * mu2
            mu1_mu2 = mu1 * mu2
            sigma1_sq = dot(av, h11[lo:hi, :]) - mu1_sq
            sigma2_sq = dot(av, h22[lo:hi, :]) - mu2_sq
            sigma12 = dot(av, h12[lo:hi, :]) - mu1_mu2

            num = (2.0 * mu1_mu2 + _C1) * (2.0 * sigma12 + _C2)
            den = (mu1_sq + mu2_sq + _C1) * (sigma1_sq + sigma2_sq + _C2)
            acc = acc + jnp.sum(num / den, axis=0, keepdims=True)

        # Per-group partial row-sum (no cross-lane reduce, no shared state).
        out_ref[...] = acc.reshape(1, 1, W)

    return kernel


def ssim_pallas(img1, img2, window_size=WINDOW_SIZE, size_average=True):
    assert img1.shape == img2.shape
    assert size_average, "only size_average=True (module default) implemented"
    # TODO(synk): size_average=False (per-batch-element mean) path not implemented.

    B, C, H, W = img1.shape              # NCHW, depthwise conv per channel
    n_planes = B * C

    cap = _tpu_vmem_capacity_bytes()
    budget = int(0.45 * cap)             # leave headroom for compiler scratch
    P = _pick_group_size(n_planes, H, W, budget)
    n_groups = n_planes // P
    rows = P * H

    g = gaussian_1d(window_size, SIGMA)
    av = _band_matrix(H, g)              # (H, H) vertical band (left-multiply)
    ah = _band_matrix(W, g).T            # (W, W) horizontal band (right-multiply)
    # TODO(synk): for very large W, tile the horizontal pass into halo'd
    # (Wt + 2*pad, Wt) column strips on an extra "parallel" grid axis so the
    # band's VMEM footprint and MAC count stop scaling as W^2.

    p1 = img1.astype(jnp.float32).reshape(n_planes * H, W)
    p2 = img2.astype(jnp.float32).reshape(n_planes * H, W)

    # DEFAULT = single-pass MXU (review item #1); tolerance validated below.
    kernel = _make_ssim_kernel(P, H, W, jax.lax.Precision.DEFAULT)

    est = _step_vmem_bytes(P, H, W)
    vmem_limit = int(min(0.9 * cap, max(32 * 1024 * 1024, 4 * est)))

    partials = pl.pallas_call(
        kernel,
        out_shape=jax.ShapeDtypeStruct((n_groups, 1, W), jnp.float32),
        grid=(n_groups,),
        in_specs=[
            # Constant-index blocks: re-DMA is skipped across steps.
            # TODO(synk): single-buffer these constant bands (pl.Buffered(1))
            # to reclaim the second pipeline buffer for larger data tiles.
            pl.BlockSpec((H, H), lambda i: (0, 0)),      # vertical band
            pl.BlockSpec((W, W), lambda i: (0, 0)),      # horizontal band
            pl.BlockSpec((rows, W), lambda i: (i, 0)),   # img1 plane group
            pl.BlockSpec((rows, W), lambda i: (i, 0)),   # img2 plane group
        ],
        out_specs=pl.BlockSpec((1, 1, W), lambda i: (i, 0, 0)),
        compiler_params=pltpu.CompilerParams(
            dimension_semantics=("parallel",),
            vmem_limit_bytes=vmem_limit),
    )(jnp.asarray(av), jnp.asarray(ah), p1, p2)

    return jnp.sum(partials) / float(B * C * H * W)


def ssim_reference_np(img1, img2, window_size=WINDOW_SIZE, sigma=SIGMA):
    """Independent float64 numpy reference mirroring the PyTorch _ssim()."""
    x1 = np.asarray(img1, dtype=np.float64)
    x2 = np.asarray(img2, dtype=np.float64)
    B, C, H, W = x1.shape
    g = gaussian_1d(window_size, sigma).astype(np.float64)
    pad = window_size // 2

    def conv(x):   # zero-padded separable cross-correlation (== F.conv2d, groups=C)
        xp = np.pad(x, ((0, 0), (0, 0), (pad, pad), (pad, pad)))
        v = np.zeros((B, C, H, W + 2 * pad), dtype=np.float64)
        for dy in range(window_size):
            v += g[dy] * xp[:, :, dy:dy + H, :]
        o = np.zeros((B, C, H, W), dtype=np.float64)
        for dx in range(window_size):
            o += g[dx] * v[:, :, :, dx:dx + W]
        return o

    mu1, mu2 = conv(x1), conv(x2)
    mu1_sq, mu2_sq, mu1_mu2 = mu1 * mu1, mu2 * mu2, mu1 * mu2
    sigma1_sq = conv(x1 * x1) - mu1_sq
    sigma2_sq = conv(x2 * x2) - mu2_sq
    sigma12 = conv(x1 * x2) - mu1_mu2
    ssim_map = ((2 * mu1_mu2 + _C1) * (2 * sigma12 + _C2)) / (
        (mu1_sq + mu2_sq + _C1) * (sigma1_sq + sigma2_sq + _C2))
    return float(ssim_map.mean())


if __name__ == "__main__":
    key = jax.random.PRNGKey(0)
    k1, k2 = jax.random.split(key)
    B, C, H, W = 2, 4, 16, 16
    img1 = jax.random.uniform(k1, (B, C, H, W), dtype=jnp.float32)
    img2 = jax.random.uniform(k2, (B, C, H, W), dtype=jnp.float32)

    result = ssim_pallas(img1, img2)
    jax.block_until_ready(result)

    ref = ssim_reference_np(np.asarray(img1), np.asarray(img2))
    assert np.isfinite(float(result))
    np.testing.assert_allclose(float(result), ref, rtol=5e-3, atol=5e-3)

    print("KERNEL_OK")
</pallas_src>

<mosaic_0001>
module attributes {stable_mosaic.version = 11 : i64} {
  func.func @kernel(%arg0: i32, %arg1: memref<16x16xf32, #tpu.memory_space<vmem>>, %arg2: memref<16x16xf32, #tpu.memory_space<vmem>>, %arg3: memref<64x16xf32, #tpu.memory_space<vmem>>, %arg4: memref<64x16xf32, #tpu.memory_space<vmem>>, %arg5: memref<1x1x16xf32, #tpu.memory_space<vmem>>) attributes {dimension_semantics = [#tpu.dimension_semantics<parallel>], iteration_bounds = array<i64: 2>, scalar_prefetch = 0 : i64, scratch_operands = 0 : i64, tpu.core_type = #tpu.core_type<tc>, window_params = [{pipeline_mode = #tpu.pipeline_mode<synchronous>, transform_indices = @transform_0, window_bounds = array<i64: 16, 16>}, {pipeline_mode = #tpu.pipeline_mode<synchronous>, transform_indices = @transform_1, window_bounds = array<i64: 16, 16>}, {transform_indices = @transform_2, window_bounds = array<i64: 64, 16>}, {transform_indices = @transform_3, window_bounds = array<i64: 64, 16>}, {transform_indices = @transform_4, window_bounds = array<i64: 1, 1, 16>}]} {
    %c0 = arith.constant 0 : index
    %c0_0 = arith.constant 0 : index
    %0 = vector.load %arg1[%c0, %c0_0] : memref<16x16xf32, #tpu.memory_space<vmem>>, vector<16x16xf32>
    %c0_1 = arith.constant 0 : index
    %c0_2 = arith.constant 0 : index
    %1 = vector.load %arg2[%c0_1, %c0_2] : memref<16x16xf32, #tpu.memory_space<vmem>>, vector<16x16xf32>
    %c0_3 = arith.constant 0 : index
    %c0_4 = arith.constant 0 : index
    %2 = vector.load %arg3[%c0_3, %c0_4] : memref<64x16xf32, #tpu.memory_space<vmem>>, vector<64x16xf32>
    %c0_5 = arith.constant 0 : index
    %c0_6 = arith.constant 0 : index
    %3 = vector.load %arg4[%c0_5, %c0_6] : memref<64x16xf32, #tpu.memory_space<vmem>>, vector<64x16xf32>
    %cst = arith.constant dense<0.000000e+00> : vector<64x16xf32>
    %4 = tpu.matmul %2, %1, %cst {dimension_numbers = #tpu.dot_dimension_numbers<[1], [0], [0], [1], [0, 0, 1, 1], [], []>} : vector<64x16xf32>, vector<16x16xf32>, vector<64x16xf32> -> vector<64x16xf32>
    %cst_7 = arith.constant dense<0.000000e+00> : vector<64x16xf32>
    %5 = tpu.matmul %3, %1, %cst_7 {dimension_numbers = #tpu.dot_dimension_numbers<[1], [0], [0], [1], [0, 0, 1, 1], [], []>} : vector<64x16xf32>, vector<16x16xf32>, vector<64x16xf32> -> vector<64x16xf32>
    %6 = arith.mulf %2, %2 : vector<64x16xf32>
    %cst_8 = arith.constant dense<0.000000e+00> : vector<64x16xf32>
    %7 = tpu.matmul %6, %1, %cst_8 {dimension_numbers = #tpu.dot_dimension_numbers<[1], [0], [0], [1], [0, 0, 1, 1], [], []>} : vector<64x16xf32>, vector<16x16xf32>, vector<64x16xf32> -> vector<64x16xf32>
    %8 = arith.mulf %3, %3 : vector<64x16xf32>
    %cst_9 = arith.constant dense<0.000000e+00> : vector<64x16xf32>
    %9 = tpu.matmul %8, %1, %cst_9 {dimension_numbers = #tpu.dot_dimension_numbers<[1], [0], [0], [1], [0, 0, 1, 1], [], []>} : vector<64x16xf32>, vector<16x16xf32>, vector<64x16xf32> -> vector<64x16xf32>
    %10 = arith.mulf %2, %3 : vector<64x16xf32>
    %cst_10 = arith.constant dense<0.000000e+00> : vector<64x16xf32>
    %11 = tpu.matmul %10, %1, %cst_10 {dimension_numbers = #tpu.dot_dimension_numbers<[1], [0], [0], [1], [0, 0, 1, 1], [], []>} : vector<64x16xf32>, vector<16x16xf32>, vector<64x16xf32> -> vector<64x16xf32>
    %cst_11 = arith.constant 0.000000e+00 : f32
    %12 = vector.broadcast %cst_11 : f32 to vector<1x16xf32>
    %13 = vector.extract_strided_slice %4 {offsets = [0, 0], sizes = [16, 16], strides = [1, 1]} : vector<64x16xf32> to vector<16x16xf32>
    %cst_12 = arith.constant dense<0.000000e+00> : vector<16x16xf32>
    %14 = tpu.matmul %0, %13, %cst_12 {dimension_numbers = #tpu.dot_dimension_numbers<[1], [0], [0], [1], [0, 0, 1, 1], [], []>} : vector<16x16xf32>, vector<16x16xf32>, vector<16x16xf32> -> vector<16x16xf32>
    %15 = vector.extract_strided_slice %5 {offsets = [0, 0], sizes = [16, 16], strides = [1, 1]} : vector<64x16xf32> to vector<16x16xf32>
    %cst_13 = arith.constant dense<0.000000e+00> : vector<16x16xf32>
    %16 = tpu.matmul %0, %15, %cst_13 {dimension_numbers = #tpu.dot_dimension_numbers<[1], [0], [0], [1], [0, 0, 1, 1], [], []>} : vector<16x16xf32>, vector<16x16xf32>, vector<16x16xf32> -> vector<16x16xf32>
    %17 = arith.mulf %14, %14 : vector<16x16xf32>
    %18 = arith.mulf %16, %16 : vector<16x16xf32>
    %19 = arith.mulf %14, %16 : vector<16x16xf32>
    %20 = vector.extract_strided_slice %7 {offsets = [0, 0], sizes = [16, 16], strides = [1, 1]} : vector<64x16xf32> to vector<16x16xf32>
    %cst_14 = arith.constant dense<0.000000e+00> : vector<16x16xf32>
    %21 = tpu.matmul %0, %20, %cst_14 {dimension_numbers = #tpu.dot_dimension_numbers<[1], [0], [0], [1], [0, 0, 1, 1], [], []>} : vector<16x16xf32>, vector<16x16xf32>, vector<16x16xf32> -> vector<16x16xf32>
    %22 = arith.subf %21, %17 : vector<16x16xf32>
    %23 = vector.extract_strided_slice %9 {offsets = [0, 0], sizes = [16, 16], strides = [1, 1]} : vector<64x16xf32> to vector<16x16xf32>
    %cst_15 = arith.constant dense<0.000000e+00> : vector<16x16xf32>
    %24 = tpu.matmul %0, %23, %cst_15 {dimension_numbers = #tpu.dot_dimension_numbers<[1], [0], [0], [1], [0, 0, 1, 1], [], []>} : vector<16x16xf32>, vector<16x16xf32>, vector<16x16xf32> -> vector<16x16xf32>
    %25 = arith.subf %24, %18 : vector<16x16xf32>
    %26 = vector.extract_strided_slice %11 {offsets = [0, 0], sizes = [16, 16], strides = [1, 1]} : vector<64x16xf32> to vector<16x16xf32>
    %cst_16 = arith.constant dense<0.000000e+00> : vector<16x16xf32>
    %27 = tpu.matmul %0, %26, %cst_16 {dimension_numbers = #tpu.dot_dimension_numbers<[1], [0], [0], [1], [0, 0, 1, 1], [], []>} : vector<16x16xf32>, vector<16x16xf32>, vector<16x16xf32> -> vector<16x16xf32>
    %28 = arith.subf %27, %19 : vector<16x16xf32>
    %cst_17 = arith.constant 2.000000e+00 : f32
    %29 = vector.broadcast %cst_17 : f32 to vector<16x16xf32>
    %30 = arith.mulf %29, %19 : vector<16x16xf32>
    %cst_18 = arith.constant 9.99999974E-5 : f32
    %31 = vector.broadcast %cst_18 : f32 to vector<16x16xf32>
    %32 = arith.addf %30, %31 : vector<16x16xf32>
    %cst_19 = arith.constant 2.000000e+00 : f32
    %33 = vector.broadcast %cst_19 : f32 to vector<16x16xf32>
    %34 = arith.mulf %33, %28 : vector<16x16xf32>
    %cst_20 = arith.constant 8.99999984E-4 : f32
    %35 = vector.broadcast %cst_20 : f32 to vector<16x16xf32>
    %36 = arith.addf %34, %35 : vector<16x16xf32>
    %37 = arith.mulf %32, %36 : vector<16x16xf32>
    %38 = arith.addf %17, %18 : vector<16x16xf32>
    %cst_21 = arith.constant 9.99999974E-5 : f32
    %39 = vector.broadcast %cst_21 : f32 to vector<16x16xf32>
    %40 = arith.addf %38, %39 : vector<16x16xf32>
    %41 = arith.addf %22, %25 : vector<16x16xf32>
    %cst_22 = arith.constant 8.99999984E-4 : f32
    %42 = vector.broadcast %cst_22 : f32 to vector<16x16xf32>
    %43 = arith.addf %41, %42 : vector<16x16xf32>
    %44 = arith.mulf %40, %43 : vector<16x16xf32>
    %45 = arith.divf %37, %44 : vector<16x16xf32>
    %cst_23 = arith.constant dense<0.000000e+00> : vector<16xf32>
    %46 = vector.multi_reduction <add>, %45, %cst_23 [0] : vector<16x16xf32> to vector<16xf32>
    %47 = vector.shape_cast %46 : vector<16xf32> to vector<1x16xf32>
    %48 = arith.addf %12, %47 : vector<1x16xf32>
    %49 = vector.extract_strided_slice %4 {offsets = [16, 0], sizes = [16, 16], strides = [1, 1]} : vector<64x16xf32> to vector<16x16xf32>
    %cst_24 = arith.constant dense<0.000000e+00> : vector<16x16xf32>
    %50 = tpu.matmul %0, %49, %cst_24 {dimension_numbers = #tpu.dot_dimension_numbers<[1], [0], [0], [1], [0, 0, 1, 1], [], []>} : vector<16x16xf32>, vector<16x16xf32>, vector<16x16xf32> -> vector<16x16xf32>
    %51 = vector.extract_strided_slice %5 {offsets = [16, 0], sizes = [16, 16], strides = [1, 1]} : vector<64x16xf32> to vector<16x16xf32>
    %cst_25 = arith.constant dense<0.000000e+00> : vector<16x16xf32>
    %52 = tpu.matmul %0, %51, %cst_25 {dimension_numbers = #tpu.dot_dimension_numbers<[1], [0], [0], [1], [0, 0, 1, 1], [], []>} : vector<16x16xf32>, vector<16x16xf32>, vector<16x16xf32> -> vector<16x16xf32>
    %53 = arith.mulf %50, %50 : vector<16x16xf32>
    %54 = arith.mulf %52, %52 : vector<16x16xf32>
    %55 = arith.mulf %50, %52 : vector<16x16xf32>
    %56 = vector.extract_strided_slice %7 {offsets = [16, 0], sizes = [16, 16], strides = [1, 1]} : vector<64x16xf32> to vector<16x16xf32>
    %cst_26 = arith.constant dense<0.000000e+00> : vector<16x16xf32>
    %57 = tpu.matmul %0, %56, %cst_26 {dimension_numbers = #tpu.dot_dimension_numbers<[1], [0], [0], [1], [0, 0, 1, 1], [], []>} : vector<16x16xf32>, vector<16x16xf32>, vector<16x16xf32> -> vector<16x16xf32>
    %58 = arith.subf %57, %53 : vector<16x16xf32>
    %59 = vector.extract_strided_slice %9 {offsets = [16, 0], sizes = [16, 16], strides = [1, 1]} : vector<64x16xf32> to vector<16x16xf32>
    %cst_27 = arith.constant dense<0.000000e+00> : vector<16x16xf32>
    %60 = tpu.matmul %0, %59, %cst_27 {dimension_numbers = #tpu.dot_dimension_numbers<[1], [0], [0], [1], [0, 0, 1, 1], [], []>} : vector<16x16xf32>, vector<16x16xf32>, vector<16x16xf32> -> vector<16x16xf32>
    %61 = arith.subf %60, %54 : vector<16x16xf32>
    %62 = vector.extract_strided_slice %11 {offsets = [16, 0], sizes = [16, 16], strides = [1, 1]} : vector<64x16xf32> to vector<16x16xf32>
    %cst_28 = arith.constant dense<0.000000e+00> : vector<16x16xf32>
    %63 = tpu.matmul %0, %62, %cst_28 {dimension_numbers = #tpu.dot_dimension_numbers<[1], [0], [0], [1], [0, 0, 1, 1], [], []>} : vector<16x16xf32>, vector<16x16xf32>, vector<16x16xf32> -> vector<16x16xf32>
    %64 = arith.subf %63, %55 : vector<16x16xf32>
    %cst_29 = arith.constant 2.000000e+00 : f32
    %65 = vector.broadcast %cst_29 : f32 to vector<16x16xf32>
    %66 = arith.mulf %65, %55 : vector<16x16xf32>
    %cst_30 = arith.constant 9.99999974E-5 : f32
    %67 = vector.broadcast %cst_30 : f32 to vector<16x16xf32>
    %68 = arith.addf %66, %67 : vector<16x16xf32>
    %cst_31 = arith.constant 2.000000e+00 : f32
    %69 = vector.broadcast %cst_31 : f32 to vector<16x16xf32>
    %70 = arith.mulf %69, %64 : vector<16x16xf32>
    %cst_32 = arith.constant 8.99999984E-4 : f32
    %71 = vector.broadcast %cst_32 : f32 to vector<16x16xf32>
    %72 = arith.addf %70, %71 : vector<16x16xf32>
    %73 = arith.mulf %68, %72 : vector<16x16xf32>
    %74 = arith.addf %53, %54 : vector<16x16xf32>
    %cst_33 = arith.constant 9.99999974E-5 : f32
    %75 = vector.broadcast %cst_33 : f32 to vector<16x16xf32>
    %76 = arith.addf %74, %75 : vector<16x16xf32>
    %77 = arith.addf %58, %61 : vector<16x16xf32>
    %cst_34 = arith.constant 8.99999984E-4 : f32
    %78 = vector.broadcast %cst_34 : f32 to vector<16x16xf32>
    %79 = arith.addf %77, %78 : vector<16x16xf32>
    %80 = arith.mulf %76, %79 : vector<16x16xf32>
    %81 = arith.divf %73, %80 : vector<16x16xf32>
    %cst_35 = arith.constant dense<0.000000e+00> : vector<16xf32>
    %82 = vector.multi_reduction <add>, %81, %cst_35 [0] : vector<16x16xf32> to vector<16xf32>
    %83 = vector.shape_cast %82 : vector<16xf32> to vector<1x16xf32>
    %84 = arith.addf %48, %83 : vector<1x16xf32>
    %85 = vector.extract_strided_slice %4 {offsets = [32, 0], sizes = [16, 16], strides = [1, 1]} : vector<64x16xf32> to vector<16x16xf32>
    %cst_36 = arith.constant dense<0.000000e+00> : vector<16x16xf32>
    %86 = tpu.matmul %0, %85, %cst_36 {dimension_numbers = #tpu.dot_dimension_numbers<[1], [0], [0], [1], [0, 0, 1, 1], [], []>} : vector<16x16xf32>, vector<16x16xf32>, vector<16x16xf32> -> vector<16x16xf32>
    %87 = vector.extract_strided_slice %5 {offsets = [32, 0], sizes = [16, 16], strides = [1, 1]} : vector<64x16xf32> to vector<16x16xf32>
    %cst_37 = arith.constant dense<0.000000e+00> : vector<16x16xf32>
    %88 = tpu.matmul %0, %87, %cst_37 {dimension_numbers = #tpu.dot_dimension_numbers<[1], [0], [0], [1], [0, 0, 1, 1], [], []>} : vector<16x16xf32>, vector<16x16xf32>, vector<16x16xf32> -> vector<16x16xf32>
    %89 = arith.mulf %86, %86 : vector<16x16xf32>
    %90 = arith.mulf %88, %88 : vector<16x16xf32>
    %91 = arith.mulf %86, %88 : vector<16x16xf32>
    %92 = vector.extract_strided_slice %7 {offsets = [32, 0], sizes = [16, 16], strides = [1, 1]} : vector<64x16xf32> to vector<16x16xf32>
    %cst_38 = arith.constant dense<0.000000e+00> : vector<16x16xf32>
    %93 = tpu.matmul %0, %92, %cst_38 {dimension_numbers = #tpu.dot_dimension_numbers<[1], [0], [0], [1], [0, 0, 1, 1], [], []>} : vector<16x16xf32>, vector<16x16xf32>, vector<16x16xf32> -> vector<16x16xf32>
    %94 = arith.subf %93, %89 : vector<16x16xf32>
    %95 = vector.extract_strided_slice %9 {offsets = [32, 0], sizes = [16, 16], strides = [1, 1]} : vector<64x16xf32> to vector<16x16xf32>
    %cst_39 = arith.constant dense<0.000000e+00> : vector<16x16xf32>
    %96 = tpu.matmul %0, %95, %cst_39 {dimension_numbers = #tpu.dot_dimension_numbers<[1], [0], [0], [1], [0, 0, 1, 1], [], []>} : vector<16x16xf32>, vector<16x16xf32>, vector<16x16xf32> -> vector<16x16xf32>
    %97 = arith.subf %96, %90 : vector<16x16xf32>
    %98 = vector.extract_strided_slice %11 {offsets = [32, 0], sizes = [16, 16], strides = [1, 1]} : vector<64x16xf32> to vector<16x16xf32>
    %cst_40 = arith.constant dense<0.000000e+00> : vector<16x16xf32>
    %99 = tpu.matmul %0, %98, %cst_40 {dimension_numbers = #tpu.dot_dimension_numbers<[1], [0], [0], [1], [0, 0, 1, 1], [], []>} : vector<16x16xf32>, vector<16x16xf32>, vector<16x16xf32> -> vector<16x16xf32>
    %100 = arith.subf %99, %91 : vector<16x16xf32>
    %cst_41 = arith.constant 2.000000e+00 : f32
    %101 = vector.broadcast %cst_41 : f32 to vector<16x16xf32>
    %102 = arith.mulf %101, %91 : vector<16x16xf32>
    %cst_42 = arith.constant 9.99999974E-5 : f32
    %103 = vector.broadcast %cst_42 : f32 to vector<16x16xf32>
    %104 = arith.addf %102, %103 : vector<16x16xf32>
    %cst_43 = arith.constant 2.000000e+00 : f32
    %105 = vector.broadcast %cst_43 : f32 to vector<16x16xf32>
    %106 = arith.mulf %105, %100 : vector<16x16xf32>
    %cst_44 = arith.constant 8.99999984E-4 : f32
    %107 = vector.broadcast %cst_44 : f32 to vector<16x16xf32>
    %108 = arith.addf %106, %107 : vector<16x16xf32>
    %109 = arith.mulf %104, %108 : vector<16x16xf32>
    %110 = arith.addf %89, %90 : vector<16x16xf32>
    %cst_45 = arith.constant 9.99999974E-5 : f32
    %111 = vector.broadcast %cst_45 : f32 to vector<16x16xf32>
    %112 = arith.addf %110, %111 : vector<16x16xf32>
    %113 = arith.addf %94, %97 : vector<16x16xf32>
    %cst_46 = arith.constant 8.99999984E-4 : f32
    %114 = vector.broadcast %cst_46 : f32 to vector<16x16xf32>
    %115 = arith.addf %113, %114 : vector<16x16xf32>
    %116 = arith.mulf %112, %115 : vector<16x16xf32>
    %117 = arith.divf %109, %116 : vector<16x16xf32>
    %cst_47 = arith.constant dense<0.000000e+00> : vector<16xf32>
    %118 = vector.multi_reduction <add>, %117, %cst_47 [0] : vector<16x16xf32> to vector<16xf32>
    %119 = vector.shape_cast %118 : vector<16xf32> to vector<1x16xf32>
    %120 = arith.addf %84, %119 : vector<1x16xf32>
    %121 = vector.extract_strided_slice %4 {offsets = [48, 0], sizes = [16, 16], strides = [1, 1]} : vector<64x16xf32> to vector<16x16xf32>
    %cst_48 = arith.constant dense<0.000000e+00> : vector<16x16xf32>
    %122 = tpu.matmul %0, %121, %cst_48 {dimension_numbers = #tpu.dot_dimension_numbers<[1], [0], [0], [1], [0, 0, 1, 1], [], []>} : vector<16x16xf32>, vector<16x16xf32>, vector<16x16xf32> -> vector<16x16xf32>
    %123 = vector.extract_strided_slice %5 {offsets = [48, 0], sizes = [16, 16], strides = [1, 1]} : vector<64x16xf32> to vector<16x16xf32>
    %cst_49 = arith.constant dense<0.000000e+00> : vector<16x16xf32>
    %124 = tpu.matmul %0, %123, %cst_49 {dimension_numbers = #tpu.dot_dimension_numbers<[1], [0], [0], [1], [0, 0, 1, 1], [], []>} : vector<16x16xf32>, vector<16x16xf32>, vector<16x16xf32> -> vector<16x16xf32>
    %125 = arith.mulf %122, %122 : vector<16x16xf32>
    %126 = arith.mulf %124, %124 : vector<16x16xf32>
    %127 = arith.mulf %122, %124 : vector<16x16xf32>
    %128 = vector.extract_strided_slice %7 {offsets = [48, 0], sizes = [16, 16], strides = [1, 1]} : vector<64x16xf32> to vector<16x16xf32>
    %cst_50 = arith.constant dense<0.000000e+00> : vector<16x16xf32>
    %129 = tpu.matmul %0, %128, %cst_50 {dimension_numbers = #tpu.dot_dimension_numbers<[1], [0], [0], [1], [0, 0, 1, 1], [], []>} : vector<16x16xf32>, vector<16x16xf32>, vector<16x16xf32> -> vector<16x16xf32>
    %130 = arith.subf %129, %125 : vector<16x16xf32>
    %131 = vector.extract_strided_slice %9 {offsets = [48, 0], sizes = [16, 16], strides = [1, 1]} : vector<64x16xf32> to vector<16x16xf32>
    %cst_51 = arith.constant dense<0.000000e+00> : vector<16x16xf32>
    %132 = tpu.matmul %0, %131, %cst_51 {dimension_numbers = #tpu.dot_dimension_numbers<[1], [0], [0], [1], [0, 0, 1, 1], [], []>} : vector<16x16xf32>, vector<16x16xf32>, vector<16x16xf32> -> vector<16x16xf32>
    %133 = arith.subf %132, %126 : vector<16x16xf32>
    %134 = vector.extract_strided_slice %11 {offsets = [48, 0], sizes = [16, 16], strides = [1, 1]} : vector<64x16xf32> to vector<16x16xf32>
    %cst_52 = arith.constant dense<0.000000e+00> : vector<16x16xf32>
    %135 = tpu.matmul %0, %134, %cst_52 {dimension_numbers = #tpu.dot_dimension_numbers<[1], [0], [0], [1], [0, 0, 1, 1], [], []>} : vector<16x16xf32>, vector<16x16xf32>, vector<16x16xf32> -> vector<16x16xf32>
    %136 = arith.subf %135, %127 : vector<16x16xf32>
    %cst_53 = arith.constant 2.000000e+00 : f32
    %137 = vector.broadcast %cst_53 : f32 to vector<16x16xf32>
    %138 = arith.mulf %137, %127 : vector<16x16xf32>
    %cst_54 = arith.constant 9.99999974E-5 : f32
    %139 = vector.broadcast %cst_54 : f32 to vector<16x16xf32>
    %140 = arith.addf %138, %139 : vector<16x16xf32>
    %cst_55 = arith.constant 2.000000e+00 : f32
    %141 = vector.broadcast %cst_55 : f32 to vector<16x16xf32>
    %142 = arith.mulf %141, %136 : vector<16x16xf32>
    %cst_56 = arith.constant 8.99999984E-4 : f32
    %143 = vector.broadcast %cst_56 : f32 to vector<16x16xf32>
    %144 = arith.addf %142, %143 : vector<16x16xf32>
    %145 = arith.mulf %140, %144 : vector<16x16xf32>
    %146 = arith.addf %125, %126 : vector<16x16xf32>
    %cst_57 = arith.constant 9.99999974E-5 : f32
    %147 = vector.broadcast %cst_57 : f32 to vector<16x16xf32>
    %148 = arith.addf %146, %147 : vector<16x16xf32>
    %149 = arith.addf %130, %133 : vector<16x16xf32>
    %cst_58 = arith.constant 8.99999984E-4 : f32
    %150 = vector.broadcast %cst_58 : f32 to vector<16x16xf32>
    %151 = arith.addf %149, %150 : vector<16x16xf32>
    %152 = arith.mulf %148, %151 : vector<16x16xf32>
    %153 = arith.divf %145, %152 : vector<16x16xf32>
    %cst_59 = arith.constant dense<0.000000e+00> : vector<16xf32>
    %154 = vector.multi_reduction <add>, %153, %cst_59 [0] : vector<16x16xf32> to vector<16xf32>
    %155 = vector.shape_cast %154 : vector<16xf32> to vector<1x16xf32>
    %156 = arith.addf %120, %155 : vector<1x16xf32>
    %157 = vector.shape_cast %156 : vector<1x16xf32> to vector<1x1x16xf32>
    %c0_60 = arith.constant 0 : index
    %c0_61 = arith.constant 0 : index
    %c0_62 = arith.constant 0 : index
    %158 = vector.load %arg5[%c0_60, %c0_61, %c0_62] : memref<1x1x16xf32, #tpu.memory_space<vmem>>, vector<1x1x16xf32>
    tpu.vector_store %arg5[%c0_60, %c0_61, %c0_62], %157 {strides = array<i32>} : memref<1x1x16xf32, #tpu.memory_space<vmem>>, vector<1x1x16xf32>,
    return
  }
  func.func @transform_0(%arg0: i32) -> (i32, i32) {
    %c0_i32 = arith.constant 0 : i32
    %c0_i32_0 = arith.constant 0 : i32
    %c0_i32_1 = arith.constant 0 : i32
    return %c0_i32, %c0_i32_0 : i32, i32
  }
  func.func @transform_1(%arg0: i32) -> (i32, i32) {
    %c0_i32 = arith.constant 0 : i32
    %c0_i32_0 = arith.constant 0 : i32
    %c0_i32_1 = arith.constant 0 : i32
    return %c0_i32, %c0_i32_0 : i32, i32
  }
  func.func @transform_2(%arg0: i32) -> (i32, i32) {
    %c0_i32 = arith.constant 0 : i32
    %c0_i32_0 = arith.constant 0 : i32
    return %arg0, %c0_i32 : i32, i32
  }
  func.func @transform_3(%arg0: i32) -> (i32, i32) {
    %c0_i32 = arith.constant 0 : i32
    %c0_i32_0 = arith.constant 0 : i32
    return %arg0, %c0_i32 : i32, i32
  }
  func.func @transform_4(%arg0: i32) -> (i32, i32, i32) {
    %c0_i32 = arith.constant 0 : i32
    %c0_i32_0 = arith.constant 0 : i32
    %c0_i32_1 = arith.constant 0 : i32
    return %arg0, %c0_i32, %c0_i32_0 : i32, i32, i32
  }
}

</mosaic_0001>

<llo_original>
// kernel: tpu_custom_call.1
$region0: #{tpu_custom_call.1}
  #allocation0 [shape = 'u32[]', space=smem, size = 0x4, offset = 0x4, fixed_abs, tag = 'smem constant byte address 0x4 - core index']
  #allocation1 [shape = 'u32[72,128]{1,0:T(1,128)}', space=vmem, size = 0x9000, scoped, tag = 'internal scratch']
  %s0 = inlined_call_operand.vmem [shape: f32[16,16], index: 0, kind: input, shape index: {}]
  %s1 = inlined_call_operand.vmem [shape: f32[16,16], index: 1, kind: input, shape index: {}]
  %s2 = inlined_call_operand.vmem [shape: f32[128,16], index: 2, kind: input, shape index: {}]
  %s3 = inlined_call_operand.vmem [shape: f32[128,16], index: 3, kind: input, shape index: {}]
  %s4 = inlined_call_operand.hbm [shape: f32[2,1,16], index: 4, kind: output, shape index: {}]
  %s5 = sld [smem:[#allocation0]]
  $region49: #{tpu_custom_call.1} parent=0
    _
  %s7 = ssub.s32 1, %s5
  %s8 = scalar_select 0, %s7, %s5
  $region1: #{tpu_custom_call.1} parent=0
    #allocation2 [shape = 'u8[1024]{0}', space=vmem, size = 0x400, scoped, tag = 'output window, operand 0']
    #allocation3 [shape = 's32[2]{0}', space=sflag, size = 0x8, scoped, tag = 'scoped memory for tpu_custom_call.1']
    %9 = vsyncpa [#allocation3], 0
    %s10 = scalar_lea.sflag [#allocation3], 1
    %11 = vsyncpa %s10, 0
    loop: start=0, step=1, limit=4
    $region2: #{tpu_custom_call.1} parent=1 // loop_pre_header
      _
    $region3: #{tpu_custom_call.1} parent=1 // loop_header
      %s13 = sphi 0, %s17
      %p14 = scmp.ge.s32.totalorder %s13, 4
      %s21 = sphi 0, %s21
      %s23 = sphi 0, %s21
      %s24 = sphi 0, %s23
      %s38 = sphi 0, %s24
      %s42 = sphi 0, %s42
      %s44 = sphi 0, %s42
      %s45 = sphi 0, %s44
      %s59 = sphi 0, %s45
      %s65 = sphi 0, %s67
      %s68 = sphi 0, %s65
      %s69 = sphi 0, %s68
      %s85 = sphi 0, %s69
      %s91 = sphi 0, %s93
      %s94 = sphi 0, %s91
      %s95 = sphi 0, %s94
      %s111 = sphi 0, %s95
      %s117 = sphi 0, %s119
      %s120 = sphi 0, %s117
      %s121 = sphi 0, %s120
      %s137 = sphi 0, %s121
    $region4: #{tpu_custom_call.1} parent=1 // loop_header_branch
      %16 = sbr.rel (%p14) target = $region8
    $region5: #{tpu_custom_call.1} parent=1 // loop_body
      %s18 = ssub.s32 %s13, 1
      %s19 = ssub.s32 %s13, 2
      %s20 = sadd.s32 %s13, 1
      %s22 = sadd.s32 %s21, 1
      %p25 = scmp.eq.s32.totalorder %s13, 1
      %p26 = scmp.ne.s32.totalorder %s21, %s23
      %p27 = scmp.eq.s32.totalorder %s13, 0
      %p28 = por %p26, %p27
      %p29 = scmp.ne.s32.totalorder %s21, %s23
      %p30 = scmp.eq.s32.totalorder %s18, 1
      %p31 = por %p29, %p30
      %p32 = scmp.ne.s32.totalorder %s23, %s24
      %p33 = scmp.eq.s32.totalorder %s18, 0
      %p34 = por %p32, %p33
      %p35 = scmp.ne.s32.totalorder %s23, %s24
      %p36 = scmp.eq.s32.totalorder %s19, 1
      %p37 = por %p35, %p36
      %p39 = scmp.ne.s32.totalorder %s24, %s38
      %p40 = scmp.eq.s32.totalorder %s19, 0
      %p41 = por %p39, %p40
      %s43 = sadd.s32 %s42, 1
      %p46 = scmp.eq.s32.totalorder %s13, 1
      %p47 = scmp.ne.s32.totalorder %s42, %s44
      %p48 = scmp.eq.s32.totalorder %s13, 0
      %p49 = por %p47, %p48
      %p50 = scmp.ne.s32.totalorder %s42, %s44
      %p51 = scmp.eq.s32.totalorder %s18, 1
      %p52 = por %p50, %p51
      %p53 = scmp.ne.s32.totalorder %s44, %s45
      %p54 = scmp.eq.s32.totalorder %s18, 0
      %p55 = por %p53, %p54
      %p56 = scmp.ne.s32.totalorder %s44, %s45
      %p57 = scmp.eq.s32.totalorder %s19, 1
      %p58 = por %p56, %p57
      %p60 = scmp.ne.s32.totalorder %s45, %s59
      %p61 = scmp.eq.s32.totalorder %s19, 0
      %p62 = por %p60, %p61
      %s63 = ssub.s32 %s13, %s20
      %p64 = scmp.eq.s32.totalorder %s63, 0
      %s66 = sadd.s32 %s65, 1
      %s67 = scalar_select %p64, %s65, %s66
      %p70 = pneg %p64
      %p71 = scmp.eq.s32.totalorder %s13, 1
      %p72 = por %p70, %p71
      %p73 = scmp.ne.s32.totalorder %s65, %s68
      %p74 = scmp.eq.s32.totalorder %s13, 0
      %p75 = por %p73, %p74
      %p76 = scmp.ne.s32.totalorder %s65, %s68
      %p77 = scmp.eq.s32.totalorder %s18, 1
      %p78 = por %p76, %p77
      %p79 = scmp.ne.s32.totalorder %s68, %s69
      %p80 = scmp.eq.s32.totalorder %s18, 0
      %p81 = por %p79, %p80
      %p82 = scmp.ne.s32.totalorder %s68, %s69
      %p83 = scmp.eq.s32.totalorder %s19, 1
      %p84 = por %p82, %p83
      %p86 = scmp.ne.s32.totalorder %s69, %s85
      %p87 = scmp.eq.s32.totalorder %s19, 0
      %p88 = por %p86, %p87
      %s89 = ssub.s32 %s13, %s20
      %p90 = scmp.eq.s32.totalorder %s89, 0
      %s92 = sadd.s32 %s91, 1
      %s93 = scalar_select %p90, %s91, %s92
      %p96 = pneg %p90
      %p97 = scmp.eq.s32.totalorder %s13, 1
      %p98 = por %p96, %p97
      %p99 = scmp.ne.s32.totalorder %s91, %s94
      %p100 = scmp.eq.s32.totalorder %s13, 0
      %p101 = por %p99, %p100
      %p102 = scmp.ne.s32.totalorder %s91, %s94
      %p103 = scmp.eq.s32.totalorder %s18, 1
      %p104 = por %p102, %p103
      %p105 = scmp.ne.s32.totalorder %s94, %s95
      %p106 = scmp.eq.s32.totalorder %s18, 0
      %p107 = por %p105, %p106
      %p108 = scmp.ne.s32.totalorder %s94, %s95
      %p109 = scmp.eq.s32.totalorder %s19, 1
      %p110 = por %p108, %p109
      %p112 = scmp.ne.s32.totalorder %s95, %s111
      %p113 = scmp.eq.s32.totalorder %s19, 0
      %p114 = por %p112, %p113
      %s115 = ssub.s32 %s13, %s20
      %p116 = scmp.eq.s32.totalorder %s115, 0
      %s118 = sadd.s32 %s117, 1
      %s119 = scalar_select %p116, %s117, %s118
      %p122 = pneg %p116
      %p123 = scmp.eq.s32.totalorder %s13, 1
      %p124 = por %p122, %p123
      %p125 = scmp.ne.s32.totalorder %s117, %s120
      %p126 = scmp.eq.s32.totalorder %s13, 0
      %p127 = por %p125, %p126
      %p128 = scmp.ne.s32.totalorder %s117, %s120
      %p129 = scmp.eq.s32.totalorder %s18, 1
      %p130 = por %p128, %p129
      %p131 = scmp.ne.s32.totalorder %s120, %s121
      %p132 = scmp.eq.s32.totalorder %s18, 0
      %p133 = por %p131, %p132
      %p134 = scmp.ne.s32.totalorder %s120, %s121
      %p135 = scmp.eq.s32.totalorder %s19, 1
      %p136 = por %p134, %p135
      %p138 = scmp.ne.s32.totalorder %s121, %s137
      %p139 = scmp.eq.s32.totalorder %s19, 0
      %p140 = por %p138, %p139
      %p141 = scmp.le.s32.totalorder 1, %s13
      %p142 = scmp.lt.s32.totalorder %s13, 3
      %p143 = pnand %p141, %p142
      %p144 = pneg %p143
      // Predicated region
      $region9: #{tpu_custom_call.1} parent=5 // pred_check
        _
      $region10: #{tpu_custom_call.1} parent=5 // pred_check_branch
        %146 = sbr.rel (%p143) target = $region12
      $region11: #{tpu_custom_call.1} parent=5 // pred_region
        %s147 = ssub.s32 %s13, 1
        // Predicated region
        $region13: #{tpu_custom_call.1} parent=11 // pred_check
          %p148 = pneg %p34
        $region14: #{tpu_custom_call.1} parent=11 // pred_check_branch
          %150 = sbr.rel (%p148) target = $region16
        $region15: #{tpu_custom_call.1} parent=11 // pred_region
          _
        $region16: #{tpu_custom_call.1} parent=11 // pred_fallthru
          _
        // Predicated region
        $region17: #{tpu_custom_call.1} parent=11 // pred_check
          %p151 = pneg %p55
        $region18: #{tpu_custom_call.1} parent=11 // pred_check_branch
          %153 = sbr.rel (%p151) target = $region20
        $region19: #{tpu_custom_call.1} parent=11 // pred_region
          _
        $region20: #{tpu_custom_call.1} parent=11 // pred_fallthru
          _
      $region12: #{tpu_custom_call.1} parent=5 // pred_fallthru
        _
      %p154 = scmp.lt.s32.totalorder %s13, 2
      // Predicated region
      $region21: #{tpu_custom_call.1} parent=5 // pred_check
        %p155 = pneg %p154
      $region22: #{tpu_custom_call.1} parent=5 // pred_check_branch
        %157 = sbr.rel (%p155) target = $region24
      $region23: #{tpu_custom_call.1} parent=5 // pred_region
        // Predicated region
        $region25: #{tpu_custom_call.1} parent=23 // pred_check
          %p158 = pneg %p75
        $region26: #{tpu_custom_call.1} parent=23 // pred_check_branch
          %160 = sbr.rel (%p158) target = $region28
        $region27: #{tpu_custom_call.1} parent=23 // pred_region
          %s161 = smul.u32 8, %s13
          %p162 = scmp.lt.s32.totalorder %s161, 15
          %s163 = scalar_select %p162, %s161, 15
          %s164 = smul.addr %s163, 8
          %s165 = scalar_lea.vmem %s2, %s164
          %s166 = smul.u32 8, %s13
        $region28: #{tpu_custom_call.1} parent=23 // pred_fallthru
          _
        // Predicated region
        $region29: #{tpu_custom_call.1} parent=23 // pred_check
          %p167 = pneg %p101
        $region30: #{tpu_custom_call.1} parent=23 // pred_check_branch
          %169 = sbr.rel (%p167) target = $region32
        $region31: #{tpu_custom_call.1} parent=23 // pred_region
          %s170 = smul.u32 8, %s13
          %p171 = scmp.lt.s32.totalorder %s170, 15
          %s172 = scalar_select %p171, %s170, 15
          %s173 = smul.addr %s172, 8
          %s174 = scalar_lea.vmem %s3, %s173
          %s175 = smul.u32 8, %s13
        $region32: #{tpu_custom_call.1} parent=23 // pred_fallthru
          _
      $region24: #{tpu_custom_call.1} parent=5 // pred_fallthru
        _
      %p176 = scmp.le.s32.totalorder 1, %s13
      %p177 = scmp.lt.s32.totalorder %s13, 3
      %p178 = pnand %p176, %p177
      %p179 = pneg %p178
      // Predicated region
      $region33: #{tpu_custom_call.1} parent=5 // pred_check
        _
      $region34: #{tpu_custom_call.1} parent=5 // pred_check_branch
        %181 = sbr.rel (%p178) target = $region36
      $region35: #{tpu_custom_call.1} parent=5 // pred_region
        %s182 = ssub.s32 %s13, 1
        %p183 = pneg %p34
        %p184 = pneg %p31
        %p185 = pneg %p55
        %p186 = pneg %p52
        %s187 = smul.u32 8, %s18
        %p188 = scmp.lt.s32.totalorder %s187, 15
        %s189 = scalar_select %p188, %s187, 15
        %s190 = smul.addr %s189, 8
        %s191 = scalar_lea.vmem %s2, %s190
        %p192 = pneg %p81
        %p193 = pneg %p78
        %s194 = smul.u32 8, %s18
        %p195 = scmp.lt.s32.totalorder %s194, 15
        %s196 = scalar_select %p195, %s194, 15
        %s197 = smul.addr %s196, 8
        %s198 = scalar_lea.vmem %s3, %s197
        %p199 = pneg %p107
        %p200 = pneg %p104
        %p201 = pneg %p133
        %p202 = pneg %p130
        %s203 = sand.u32 %s120, 1
        %s204 = scalar_lea.sflag [#allocation3], %s203
        %s205 = sand.u32 %s120, 1
        %s206 = scalar_lea.vmem [#allocation2], %s205
        %s207 = smul.u32 8, %s18
        %p208 = scmp.lt.s32.totalorder %s207, 15
        %s209 = scalar_select %p208, %s207, 15
        %s210 = smul.addr %s209, 8
        %s211 = scalar_lea.vmem %s2, %s210
        %s212 = smul.u32 8, %s18
        %s213 = smul.u32 8, %s18
        %p214 = scmp.lt.s32.totalorder %s213, 15
        %s215 = scalar_select %p214, %s213, 15
        %s216 = smul.addr %s215, 8
        %s217 = scalar_lea.vmem %s3, %s216
        %s218 = smul.u32 8, %s18
        %v219 = vld [vmem:[%s0] sm:$0xff]
        %v220 = vld [vmem:[%s0 + $0x8] sm:$0xff]
        %v221 = vld [vmem:[%s1] sm:$0xff]
        %v222 = vld [vmem:[%s1 + $0x8] sm:$0xff]
        %v223 = vld [vmem:[%s211] sm:$0xff]
        %v224 = vld [vmem:[%s211 + $0x8] sm:$0xff]
        %v225 = vld [vmem:[%s211 + $0x10] sm:$0xff]
        %v226 = vld [vmem:[%s211 + $0x18] sm:$0xff]
        %v227 = vld [vmem:[%s211 + $0x20] sm:$0xff]
        %v228 = vld [vmem:[%s211 + $0x28] sm:$0xff]
        %v229 = vld [vmem:[%s211 + $0x30] sm:$0xff]
        %v230 = vld [vmem:[%s211 + $0x38] sm:$0xff]
        %v231 = vld [vmem:[%s217] sm:$0xff]
        %v232 = vld [vmem:[%s217 + $0x8] sm:$0xff]
        %v233 = vld [vmem:[%s217 + $0x10] sm:$0xff]
        %v234 = vld [vmem:[%s217 + $0x18] sm:$0xff]
        %v235 = vld [vmem:[%s217 + $0x20] sm:$0xff]
        %v236 = vld [vmem:[%s217 + $0x28] sm:$0xff]
        %v237 = vld [vmem:[%s217 + $0x30] sm:$0xff]
        %v238 = vld [vmem:[%s217 + $0x38] sm:$0xff]
        %vm239 = vcmask 130048
        %v241 = vsel %vm239, %v223, 0
        %v244 = vsel %vm239, %v224, 0
        %v247 = vsel %vm239, %v225, 0
        %v250 = vsel %vm239, %v226, 0
        %v253 = vsel %vm239, %v227, 0
        %v256 = vsel %vm239, %v228, 0
        %v259 = vsel %vm239, %v229, 0
        %v262 = vsel %vm239, %v230, 0
        %264 = vmatpush.msra.mxu0 0.0
        %265 = vmatpush.msra.mxu0 0.0
        %266 = vmatpush.msra.mxu0 0.0
        %267 = vmatpush.msra.mxu0 0.0
        %268 = vmatpush.msra.mxu0 0.0
        %269 = vmatpush.msra.mxu0 0.0
        %270 = vmatpush.msra.mxu0 0.0
        %271 = vmatpush.msra.mxu0 0.0
        %272 = vmatpush.msra.mxu0 0.0
        %273 = vmatpush.msra.mxu0 0.0
        %274 = vmatpush.msra.mxu0 0.0
        %275 = vmatpush.msra.mxu0 0.0
        %276 = vmatpush.msra.mxu0 0.0
        %277 = vmatpush.msra.mxu0 0.0
        %278 = vmatpush.msra.mxu0 %v222
        %279 = vmatpush.msra.mxu0 %v221
        %280 = vmatmul.f32.gmra.mxu0 %v241
        %v281 = vpop.f32.mrf.mxu0
        %v282 = vadd.f32 0.0, %v281
        %283 = vmatmul.f32.gmra.mxu0 %v244
        %v284 = vpop.f32.mrf.mxu0
        %v285 = vadd.f32 0.0, %v284
        %286 = vmatmul.f32.gmra.mxu0 %v247
        %v287 = vpop.f32.mrf.mxu0
        %v288 = vadd.f32 0.0, %v287
        %289 = vmatmul.f32.gmra.mxu0 %v250
        %v290 = vpop.f32.mrf.mxu0
        %v291 = vadd.f32 0.0, %v290
        %292 = vmatmul.f32.gmra.mxu0 %v253
        %v293 = vpop.f32.mrf.mxu0
        %v294 = vadd.f32 0.0, %v293
        %295 = vmatmul.f32.gmra.mxu0 %v256
        %v296 = vpop.f32.mrf.mxu0
        %v297 = vadd.f32 0.0, %v296
        %298 = vmatmul.f32.gmra.mxu0 %v259
        %v299 = vpop.f32.mrf.mxu0
        %v300 = vadd.f32 0.0, %v299
        %301 = vmatmul.f32.gmra.mxu0 %v262
        %v302 = vpop.f32.mrf.mxu0
        %v303 = vadd.f32 0.0, %v302
        %304 = vdwg.mxu0
        %v306 = vsel %vm239, %v231, 0
        %v309 = vsel %vm239, %v232, 0
        %v312 = vsel %vm239, %v233, 0
        %v315 = vsel %vm239, %v234, 0
        %v318 = vsel %vm239, %v235, 0
        %v321 = vsel %vm239, %v236, 0
        %v324 = vsel %vm239, %v237, 0
        %v327 = vsel %vm239, %v238, 0
        %329 = vmatpush.msra.mxu0 0.0
        %330 = vmatpush.msra.mxu0 0.0
        %331 = vmatpush.msra.mxu0 0.0
        %332 = vmatpush.msra.mxu0 0.0
        %333 = vmatpush.msra.mxu0 0.0
        %334 = vmatpush.msra.mxu0 0.0
        %335 = vmatpush.msra.mxu0 0.0
        %336 = vmatpush.msra.mxu0 0.0
        %337 = vmatpush.msra.mxu0 0.0
        %338 = vmatpush.msra.mxu0 0.0
        %339 = vmatpush.msra.mxu0 0.0
        %340 = vmatpush.msra.mxu0 0.0
        %341 = vmatpush.msra.mxu0 0.0
        %342 = vmatpush.msra.mxu0 0.0
        %343 = vmatpush.msra.mxu0 %v222
        %344 = vmatpush.msra.mxu0 %v221
        %345 = vmatmul.f32.gmra.mxu0 %v306
        %v346 = vpop.f32.mrf.mxu0
        %v347 = vadd.f32 0.0, %v346
        %348 = vmatmul.f32.gmra.mxu0 %v309
        %v349 = vpop.f32.mrf.mxu0
        %v350 = vadd.f32 0.0, %v349
        %351 = vmatmul.f32.gmra.mxu0 %v312
        %v352 = vpop.f32.mrf.mxu0
        %v353 = vadd.f32 0.0, %v352
        %354 = vmatmul.f32.gmra.mxu0 %v315
        %v355 = vpop.f32.mrf.mxu0
        %v356 = vadd.f32 0.0, %v355
        %357 = vmatmul.f32.gmra.mxu0 %v318
        %v358 = vpop.f32.mrf.mxu0
        %v359 = vadd.f32 0.0, %v358
        %360 = vmatmul.f32.gmra.mxu0 %v321
        %v361 = vpop.f32.mrf.mxu0
        %v362 = vadd.f32 0.0, %v361
        %363 = vmatmul.f32.gmra.mxu0 %v324
        %v364 = vpop.f32.mrf.mxu0
        %v365 = vadd.f32 0.0, %v364
        %366 = vmatmul.f32.gmra.mxu0 %v327
        %v367 = vpop.f32.mrf.mxu0
        %v368 = vadd.f32 0.0, %v367
        %369 = vdwg.mxu0
        %v370 = vmul.f32 %v223, %v223
        %v371 = vmul.f32 %v224, %v224
        %v372 = vmul.f32 %v225, %v225
        %v373 = vmul.f32 %v226, %v226
        %v374 = vmul.f32 %v227, %v227
        %v375 = vmul.f32 %v228, %v228
        %v376 = vmul.f32 %v229, %v229
        %v377 = vmul.f32 %v230, %v230
        %v379 = vsel %vm239, %v370, 0
        %v382 = vsel %vm239, %v371, 0
        %v385 = vsel %vm239, %v372, 0
        %v388 = vsel %vm239, %v373, 0
        %v391 = vsel %vm239, %v374, 0
        %v394 = vsel %vm239, %v375, 0
        %v397 = vsel %vm239, %v376, 0
        %v400 = vsel %vm239, %v377, 0
        %402 = vmatpush.msra.mxu0 0.0
        %403 = vmatpush.msra.mxu0 0.0
        %404 = vmatpush.msra.mxu0 0.0
        %405 = vmatpush.msra.mxu0 0.0
        %406 = vmatpush.msra.mxu0 0.0
        %407 = vmatpush.msra.mxu0 0.0
        %408 = vmatpush.msra.mxu0 0.0
        %409 = vmatpush.msra.mxu0 0.0
        %410 = vmatpush.msra.mxu0 0.0
        %411 = vmatpush.msra.mxu0 0.0
        %412 = vmatpush.msra.mxu0 0.0
        %413 = vmatpush.msra.mxu0 0.0
        %414 = vmatpush.msra.mxu0 0.0
        %415 = vmatpush.msra.mxu0 0.0
        %416 = vmatpush.msra.mxu0 %v222
        %417 = vmatpush.msra.mxu0 %v221
        %418 = vmatmul.f32.gmra.mxu0 %v379
        %v419 = vpop.f32.mrf.mxu0
        %v420 = vadd.f32 0.0, %v419
        %421 = vmatmul.f32.gmra.mxu0 %v382
        %v422 = vpop.f32.mrf.mxu0
        %v423 = vadd.f32 0.0, %v422
        %424 = vmatmul.f32.gmra.mxu0 %v385
        %v425 = vpop.f32.mrf.mxu0
        %v426 = vadd.f32 0.0, %v425
        %427 = vmatmul.f32.gmra.mxu0 %v388
        %v428 = vpop.f32.mrf.mxu0
        %v429 = vadd.f32 0.0, %v428
        %430 = vmatmul.f32.gmra.mxu0 %v391
        %v431 = vpop.f32.mrf.mxu0
        %v432 = vadd.f32 0.0, %v431
        %433 = vmatmul.f32.gmra.mxu0 %v394
        %v434 = vpop.f32.mrf.mxu0
        %v435 = vadd.f32 0.0, %v434
        %436 = vmatmul.f32.gmra.mxu0 %v397
        %v437 = vpop.f32.mrf.mxu0
        %v438 = vadd.f32 0.0, %v437
        %439 = vmatmul.f32.gmra.mxu0 %v400
        %v440 = vpop.f32.mrf.mxu0
        %v441 = vadd.f32 0.0, %v440
        %442 = vdwg.mxu0
        %v443 = vmul.f32 %v231, %v231
        %v444 = vmul.f32 %v232, %v232
        %v445 = vmul.f32 %v233, %v233
        %v446 = vmul.f32 %v234, %v234
        %v447 = vmul.f32 %v235, %v235
        %v448 = vmul.f32 %v236, %v236
        %v449 = vmul.f32 %v237, %v237
        %v450 = vmul.f32 %v238, %v238
        %v452 = vsel %vm239, %v443, 0
        %v455 = vsel %vm239, %v444, 0
        %v458 = vsel %vm239, %v445, 0
        %v461 = vsel %vm239, %v446, 0
        %v464 = vsel %vm239, %v447, 0
        %v467 = vsel %vm239, %v448, 0
        %v470 = vsel %vm239, %v449, 0
        %v473 = vsel %vm239, %v450, 0
        %475 = vmatpush.msra.mxu0 0.0
        %476 = vmatpush.msra.mxu0 0.0
        %477 = vmatpush.msra.mxu0 0.0
        %478 = vmatpush.msra.mxu0 0.0
        %479 = vmatpush.msra.mxu0 0.0
        %480 = vmatpush.msra.mxu0 0.0
        %481 = vmatpush.msra.mxu0 0.0
        %482 = vmatpush.msra.mxu0 0.0
        %483 = vmatpush.msra.mxu0 0.0
        %484 = vmatpush.msra.mxu0 0.0
        %485 = vmatpush.msra.mxu0 0.0
        %486 = vmatpush.msra.mxu0 0.0
        %487 = vmatpush.msra.mxu0 0.0
        %488 = vmatpush.msra.mxu0 0.0
        %489 = vmatpush.msra.mxu0 %v222
        %490 = vmatpush.msra.mxu0 %v221
        %491 = vmatmul.f32.gmra.mxu0 %v452
        %v492 = vpop.f32.mrf.mxu0
        %v493 = vadd.f32 0.0, %v492
        %494 = vmatmul.f32.gmra.mxu0 %v455
        %v495 = vpop.f32.mrf.mxu0
        %v496 = vadd.f32 0.0, %v495
        %497 = vmatmul.f32.gmra.mxu0 %v458
        %v498 = vpop.f32.mrf.mxu0
        %v499 = vadd.f32 0.0, %v498
        %500 = vmatmul.f32.gmra.mxu0 %v461
        %v501 = vpop.f32.mrf.mxu0
        %v502 = vadd.f32 0.0, %v501
        %503 = vmatmul.f32.gmra.mxu0 %v464
        %v504 = vpop.f32.mrf.mxu0
        %v505 = vadd.f32 0.0, %v504
        %506 = vmatmul.f32.gmra.mxu0 %v467
        %v507 = vpop.f32.mrf.mxu0
        %v508 = vadd.f32 0.0, %v507
        %509 = vmatmul.f32.gmra.mxu0 %v470
        %v510 = vpop.f32.mrf.mxu0
        %v511 = vadd.f32 0.0, %v510
        %512 = vmatmul.f32.gmra.mxu0 %v473
        %v513 = vpop.f32.mrf.mxu0
        %v514 = vadd.f32 0.0, %v513
        %515 = vdwg.mxu0
        %v516 = vmul.f32 %v223, %v231
        %v517 = vmul.f32 %v224, %v232
        %v518 = vmul.f32 %v225, %v233
        %v519 = vmul.f32 %v226, %v234
        %v520 = vmul.f32 %v227, %v235
        %v521 = vmul.f32 %v228, %v236
        %v522 = vmul.f32 %v229, %v237
        %v523 = vmul.f32 %v230, %v238
        %v525 = vsel %vm239, %v516, 0
        %v528 = vsel %vm239, %v517, 0
        %v531 = vsel %vm239, %v518, 0
        %v534 = vsel %vm239, %v519, 0
        %v537 = vsel %vm239, %v520, 0
        %v540 = vsel %vm239, %v521, 0
        %v543 = vsel %vm239, %v522, 0
        %v546 = vsel %vm239, %v523, 0
        %548 = vmatpush.msra.mxu0 0.0
        %549 = vmatpush.msra.mxu0 0.0
        %550 = vmatpush.msra.mxu0 0.0
        %551 = vmatpush.msra.mxu0 0.0
        %552 = vmatpush.msra.mxu0 0.0
        %553 = vmatpush.msra.mxu0 0.0
        %554 = vmatpush.msra.mxu0 0.0
        %555 = vmatpush.msra.mxu0 0.0
        %556 = vmatpush.msra.mxu0 0.0
        %557 = vmatpush.msra.mxu0 0.0
        %558 = vmatpush.msra.mxu0 0.0
        %559 = vmatpush.msra.mxu0 0.0
        %560 = vmatpush.msra.mxu0 0.0
        %561 = vmatpush.msra.mxu0 0.0
        %562 = vmatpush.msra.mxu0 %v222
        %563 = vmatpush.msra.mxu0 %v221
        %564 = vmatmul.f32.gmra.mxu0 %v525
        %v565 = vpop.f32.mrf.mxu0
        %v566 = vadd.f32 0.0, %v565
        %567 = vmatmul.f32.gmra.mxu0 %v528
        %v568 = vpop.f32.mrf.mxu0
        %v569 = vadd.f32 0.0, %v568
        %570 = vmatmul.f32.gmra.mxu0 %v531
        %v571 = vpop.f32.mrf.mxu0
        %v572 = vadd.f32 0.0, %v571
        %573 = vmatmul.f32.gmra.mxu0 %v534
        %v574 = vpop.f32.mrf.mxu0
        %v575 = vadd.f32 0.0, %v574
        %576 = vmatmul.f32.gmra.mxu0 %v537
        %v577 = vpop.f32.mrf.mxu0
        %v578 = vadd.f32 0.0, %v577
        %579 = vmatmul.f32.gmra.mxu0 %v540
        %v580 = vpop.f32.mrf.mxu0
        %v581 = vadd.f32 0.0, %v580
        %582 = vmatmul.f32.gmra.mxu0 %v543
        %v583 = vpop.f32.mrf.mxu0
        %v584 = vadd.f32 0.0, %v583
        %585 = vmatmul.f32.gmra.mxu0 %v546
        %v586 = vpop.f32.mrf.mxu0
        %v587 = vadd.f32 0.0, %v586
        %588 = vdwg.mxu0
        %v590 = vsel %vm239, %v219, 0
        %v593 = vsel %vm239, %v220, 0
        %595 = vmatpush.msra.mxu0 0.0
        %596 = vmatpush.msra.mxu0 0.0
        %597 = vmatpush.msra.mxu0 0.0
        %598 = vmatpush.msra.mxu0 0.0
        %599 = vmatpush.msra.mxu0 0.0
        %600 = vmatpush.msra.mxu0 0.0
        %601 = vmatpush.msra.mxu0 0.0
        %602 = vmatpush.msra.mxu0 0.0
        %603 = vmatpush.msra.mxu0 0.0
        %604 = vmatpush.msra.mxu0 0.0
        %605 = vmatpush.msra.mxu0 0.0
        %606 = vmatpush.msra.mxu0 0.0
        %607 = vmatpush.msra.mxu0 0.0
        %608 = vmatpush.msra.mxu0 0.0
        %609 = vmatpush.msra.mxu0 %v285
        %610 = vmatpush.msra.mxu0 %v282
        %611 = vmatmul.f32.gmra.mxu0 %v590
        %v612 = vpop.f32.mrf.mxu0
        %v613 = vadd.f32 0.0, %v612
        %614 = vmatmul.f32.gmra.mxu0 %v593
        %v615 = vpop.f32.mrf.mxu0
        %v616 = vadd.f32 0.0, %v615
        %617 = vdwg.mxu0
        %618 = vmatpush.msra.mxu0 0.0
        %619 = vmatpush.msra.mxu0 0.0
        %620 = vmatpush.msra.mxu0 0.0
        %621 = vmatpush.msra.mxu0 0.0
        %622 = vmatpush.msra.mxu0 0.0
        %623 = vmatpush.msra.mxu0 0.0
        %624 = vmatpush.msra.mxu0 0.0
        %625 = vmatpush.msra.mxu0 0.0
        %626 = vmatpush.msra.mxu0 0.0
        %627 = vmatpush.msra.mxu0 0.0
        %628 = vmatpush.msra.mxu0 0.0
        %629 = vmatpush.msra.mxu0 0.0
        %630 = vmatpush.msra.mxu0 0.0
        %631 = vmatpush.msra.mxu0 0.0
        %632 = vmatpush.msra.mxu0 %v350
        %633 = vmatpush.msra.mxu0 %v347
        %634 = vmatmul.f32.gmra.mxu0 %v590
        %v635 = vpop.f32.mrf.mxu0
        %v636 = vadd.f32 0.0, %v635
        %637 = vmatmul.f32.gmra.mxu0 %v593
        %v638 = vpop.f32.mrf.mxu0
        %v639 = vadd.f32 0.0, %v638
        %640 = vdwg.mxu0
        %v641 = vmul.f32 %v613, %v613
        %v642 = vmul.f32 %v616, %v616
        %v643 = vmul.f32 %v636, %v636
        %v644 = vmul.f32 %v639, %v639
        %v645 = vmul.f32 %v613, %v636
        %v646 = vmul.f32 %v616, %v639
        %647 = vmatpush.msra.mxu0 0.0
        %648 = vmatpush.msra.mxu0 0.0
        %649 = vmatpush.msra.mxu0 0.0
        %650 = vmatpush.msra.mxu0 0.0
        %651 = vmatpush.msra.mxu0 0.0
        %652 = vmatpush.msra.mxu0 0.0
        %653 = vmatpush.msra.mxu0 0.0
        %654 = vmatpush.msra.mxu0 0.0
        %655 = vmatpush.msra.mxu0 0.0
        %656 = vmatpush.msra.mxu0 0.0
        %657 = vmatpush.msra.mxu0 0.0
        %658 = vmatpush.msra.mxu0 0.0
        %659 = vmatpush.msra.mxu0 0.0
        %660 = vmatpush.msra.mxu0 0.0
        %661 = vmatpush.msra.mxu0 %v423
        %662 = vmatpush.msra.mxu0 %v420
        %663 = vmatmul.f32.gmra.mxu0 %v590
        %v664 = vpop.f32.mrf.mxu0
        %v665 = vadd.f32 0.0, %v664
        %666 = vmatmul.f32.gmra.mxu0 %v593
        %v667 = vpop.f32.mrf.mxu0
        %v668 = vadd.f32 0.0, %v667
        %669 = vdwg.mxu0
        %v670 = vsub.f32 %v665, %v641
        %v671 = vsub.f32 %v668, %v642
        %672 = vmatpush.msra.mxu0 0.0
        %673 = vmatpush.msra.mxu0 0.0
        %674 = vmatpush.msra.mxu0 0.0
        %675 = vmatpush.msra.mxu0 0.0
        %676 = vmatpush.msra.mxu0 0.0
        %677 = vmatpush.msra.mxu0 0.0
        %678 = vmatpush.msra.mxu0 0.0
        %679 = vmatpush.msra.mxu0 0.0
        %680 = vmatpush.msra.mxu0 0.0
        %681 = vmatpush.msra.mxu0 0.0
        %682 = vmatpush.msra.mxu0 0.0
        %683 = vmatpush.msra.mxu0 0.0
        %684 = vmatpush.msra.mxu0 0.0
        %685 = vmatpush.msra.mxu0 0.0
        %686 = vmatpush.msra.mxu0 %v496
        %687 = vmatpush.msra.mxu0 %v493
        %688 = vmatmul.f32.gmra.mxu0 %v590
        %v689 = vpop.f32.mrf.mxu0
        %v690 = vadd.f32 0.0, %v689
        %691 = vmatmul.f32.gmra.mxu0 %v593
        %v692 = vpop.f32.mrf.mxu0
        %v693 = vadd.f32 0.0, %v692
        %694 = vdwg.mxu0
        %v695 = vsub.f32 %v690, %v643
        %v696 = vsub.f32 %v693, %v644
        %697 = vmatpush.msra.mxu0 0.0
        %698 = vmatpush.msra.mxu0 0.0
        %699 = vmatpush.msra.mxu0 0.0
        %700 = vmatpush.msra.mxu0 0.0
        %701 = vmatpush.msra.mxu0 0.0
        %702 = vmatpush.msra.mxu0 0.0
        %703 = vmatpush.msra.mxu0 0.0
        %704 = vmatpush.msra.mxu0 0.0
        %705 = vmatpush.msra.mxu0 0.0
        %706 = vmatpush.msra.mxu0 0.0
        %707 = vmatpush.msra.mxu0 0.0
        %708 = vmatpush.msra.mxu0 0.0
        %709 = vmatpush.msra.mxu0 0.0
        %710 = vmatpush.msra.mxu0 0.0
        %711 = vmatpush.msra.mxu0 %v569
        %712 = vmatpush.msra.mxu0 %v566
        %713 = vmatmul.f32.gmra.mxu0 %v590
        %v714 = vpop.f32.mrf.mxu0
        %v715 = vadd.f32 0.0, %v714
        %716 = vmatmul.f32.gmra.mxu0 %v593
        %v717 = vpop.f32.mrf.mxu0
        %v718 = vadd.f32 0.0, %v717
        %719 = vdwg.mxu0
        %v720 = vsub.f32 %v715, %v645
        %v721 = vsub.f32 %v718, %v646
        %v722 = vmul.f32 %v645, 2.0
        %v723 = vmul.f32 %v646, 2.0
        %v724 = vadd.f32 %v722, 0.0001
        %v725 = vadd.f32 %v723, 0.0001
        %v726 = vmul.f32 %v720, 2.0
        %v727 = vmul.f32 %v721, 2.0
        %v728 = vadd.f32 %v726, 0.0009
        %v729 = vadd.f32 %v727, 0.0009
        %v730 = vmul.f32 %v724, %v728
        %v731 = vmul.f32 %v725, %v729
        %v732 = vadd.f32 %v641, %v643
        %v733 = vadd.f32 %v642, %v644
        %v734 = vadd.f32 %v732, 0.0001
        %v735 = vadd.f32 %v733, 0.0001
        %v736 = vadd.f32 %v670, %v695
        %v737 = vadd.f32 %v671, %v696
        %v738 = vadd.f32 %v736, 0.0009
        %v739 = vadd.f32 %v737, 0.0009
        %v740 = vmul.f32 %v734, %v738
        %v741 = vmul.f32 %v735, %v739
        %v742 = vrcp.pop %v740
        %v743 = vmul.f32 %v740, %v742
        %v744 = vsub.f32 1.0, %v743
        %v745 = vmul.f32 %v742, %v744
        %v746 = vadd.f32 %v742, %v745
        %vm747 = vweird.f32 %v740
        %vm748 = vweird.f32 %v742
        %vm749 = vmor %vm747, %vm748
        %v750 = vsel %vm749, %v742, %v746
        %v751 = vand.u32 2147483647, %v740
        %vm752 = vcmp.eq.f32.partialorder %v751, 8.507059e+37
        %v753 = vand.u32 %v740, 2147483648
        %v754 = vor.u32 1.1754944e-38, %v753
        %v755 = vsel %vm752, %v754, %v750
        %v756 = vmul.f32 %v730, %v755
        %v757 = vrcp.pop %v741
        %v758 = vmul.f32 %v741, %v757
        %v759 = vsub.f32 1.0, %v758
        %v760 = vmul.f32 %v757, %v759
        %v761 = vadd.f32 %v757, %v760
        %vm762 = vweird.f32 %v741
        %vm763 = vweird.f32 %v757
        %vm764 = vmor %vm762, %vm763
        %v765 = vsel %vm764, %v757, %v761
        %v766 = vand.u32 2147483647, %v741
        %vm767 = vcmp.eq.f32.partialorder %v766, 8.507059e+37
        %v768 = vand.u32 %v741, 2147483648
        %v769 = vor.u32 1.1754944e-38, %v768
        %v770 = vsel %vm767, %v769, %v765
        %v771 = vmul.f32 %v731, %v770
        %v772 = vsel %vm239, %v756, 0.0
        %v773 = vsel %vm239, %v771, 0.0
        %v774 = vadd.f32 %v772, %v773
        %v775 = vrot.slane %v774, 4
        %v776 = vadd.f32 %v774, %v775
        %v777 = vrot.slane %v776, 2
        %v778 = vadd.f32 %v776, %v777
        %v779 = vrot.slane %v778, 1
        %v780 = vadd.f32 %v778, %v779
        %v781 = vadd.f32 %v780, 0.0
        %782 = vmatpush.msra.mxu0 0.0
        %783 = vmatpush.msra.mxu0 0.0
        %784 = vmatpush.msra.mxu0 0.0
        %785 = vmatpush.msra.mxu0 0.0
        %786 = vmatpush.msra.mxu0 0.0
        %787 = vmatpush.msra.mxu0 0.0
        %788 = vmatpush.msra.mxu0 0.0
        %789 = vmatpush.msra.mxu0 0.0
        %790 = vmatpush.msra.mxu0 0.0
        %791 = vmatpush.msra.mxu0 0.0
        %792 = vmatpush.msra.mxu0 0.0
        %793 = vmatpush.msra.mxu0 0.0
        %794 = vmatpush.msra.mxu0 0.0
        %795 = vmatpush.msra.mxu0 0.0
        %796 = vmatpush.msra.mxu0 %v291
        %797 = vmatpush.msra.mxu0 %v288
        %798 = vmatmul.f32.gmra.mxu0 %v590
        %v799 = vpop.f32.mrf.mxu0
        %v800 = vadd.f32 0.0, %v799
        %801 = vmatmul.f32.gmra.mxu0 %v593
        %v802 = vpop.f32.mrf.mxu0
        %v803 = vadd.f32 0.0, %v802
        %804 = vdwg.mxu0
        %805 = vmatpush.msra.mxu0 0.0
        %806 = vmatpush.msra.mxu0 0.0
        %807 = vmatpush.msra.mxu0 0.0
        %808 = vmatpush.msra.mxu0 0.0
        %809 = vmatpush.msra.mxu0 0.0
        %810 = vmatpush.msra.mxu0 0.0
        %811 = vmatpush.msra.mxu0 0.0
        %812 = vmatpush.msra.mxu0 0.0
        %813 = vmatpush.msra.mxu0 0.0
        %814 = vmatpush.msra.mxu0 0.0
        %815 = vmatpush.msra.mxu0 0.0
        %816 = vmatpush.msra.mxu0 0.0
        %817 = vmatpush.msra.mxu0 0.0
        %818 = vmatpush.msra.mxu0 0.0
        %819 = vmatpush.msra.mxu0 %v356
        %820 = vmatpush.msra.mxu0 %v353
        %821 = vmatmul.f32.gmra.mxu0 %v590
        %v822 = vpop.f32.mrf.mxu0
        %v823 = vadd.f32 0.0, %v822
        %824 = vmatmul.f32.gmra.mxu0 %v593
        %v825 = vpop.f32.mrf.mxu0
        %v826 = vadd.f32 0.0, %v825
        %827 = vdwg.mxu0
        %v828 = vmul.f32 %v800, %v800
        %v829 = vmul.f32 %v803, %v803
        %v830 = vmul.f32 %v823, %v823
        %v831 = vmul.f32 %v826, %v826
        %v832 = vmul.f32 %v800, %v823
        %v833 = vmul.f32 %v803, %v826
        %834 = vmatpush.msra.mxu0 0.0
        %835 = vmatpush.msra.mxu0 0.0
        %836 = vmatpush.msra.mxu0 0.0
        %837 = vmatpush.msra.mxu0 0.0
        %838 = vmatpush.msra.mxu0 0.0
        %839 = vmatpush.msra.mxu0 0.0
        %840 = vmatpush.msra.mxu0 0.0
        %841 = vmatpush.msra.mxu0 0.0
        %842 = vmatpush.msra.mxu0 0.0
        %843 = vmatpush.msra.mxu0 0.0
        %844 = vmatpush.msra.mxu0 0.0
        %845 = vmatpush.msra.mxu0 0.0
        %846 = vmatpush.msra.mxu0 0.0
        %847 = vmatpush.msra.mxu0 0.0
        %848 = vmatpush.msra.mxu0 %v429
        %849 = vmatpush.msra.mxu0 %v426
        %850 = vmatmul.f32.gmra.mxu0 %v590
        %v851 = vpop.f32.mrf.mxu0
        %v852 = vadd.f32 0.0, %v851
        %853 = vmatmul.f32.gmra.mxu0 %v593
        %v854 = vpop.f32.mrf.mxu0
        %v855 = vadd.f32 0.0, %v854
        %856 = vdwg.mxu0
        %v857 = vsub.f32 %v852, %v828
        %v858 = vsub.f32 %v855, %v829
        %859 = vmatpush.msra.mxu0 0.0
        %860 = vmatpush.msra.mxu0 0.0
        %861 = vmatpush.msra.mxu0 0.0
        %862 = vmatpush.msra.mxu0 0.0
        %863 = vmatpush.msra.mxu0 0.0
        %864 = vmatpush.msra.mxu0 0.0
        %865 = vmatpush.msra.mxu0 0.0
        %866 = vmatpush.msra.mxu0 0.0
        %867 = vmatpush.msra.mxu0 0.0
        %868 = vmatpush.msra.mxu0 0.0
        %869 = vmatpush.msra.mxu0 0.0
        %870 = vmatpush.msra.mxu0 0.0
        %871 = vmatpush.msra.mxu0 0.0
        %872 = vmatpush.msra.mxu0 0.0
        %873 = vmatpush.msra.mxu0 %v502
        %874 = vmatpush.msra.mxu0 %v499
        %875 = vmatmul.f32.gmra.mxu0 %v590
        %v876 = vpop.f32.mrf.mxu0
        %v877 = vadd.f32 0.0, %v876
        %878 = vmatmul.f32.gmra.mxu0 %v593
        %v879 = vpop.f32.mrf.mxu0
        %v880 = vadd.f32 0.0, %v879
        %881 = vdwg.mxu0
        %v882 = vsub.f32 %v877, %v830
        %v883 = vsub.f32 %v880, %v831
        %884 = vmatpush.msra.mxu0 0.0
        %885 = vmatpush.msra.mxu0 0.0
        %886 = vmatpush.msra.mxu0 0.0
        %887 = vmatpush.msra.mxu0 0.0
        %888 = vmatpush.msra.mxu0 0.0
        %889 = vmatpush.msra.mxu0 0.0
        %890 = vmatpush.msra.mxu0 0.0
        %891 = vmatpush.msra.mxu0 0.0
        %892 = vmatpush.msra.mxu0 0.0
        %893 = vmatpush.msra.mxu0 0.0
        %894 = vmatpush.msra.mxu0 0.0
        %895 = vmatpush.msra.mxu0 0.0
        %896 = vmatpush.msra.mxu0 0.0
        %897 = vmatpush.msra.mxu0 0.0
        %898 = vmatpush.msra.mxu0 %v575
        %899 = vmatpush.msra.mxu0 %v572
        %900 = vmatmul.f32.gmra.mxu0 %v590
        %v901 = vpop.f32.mrf.mxu0
        %v902 = vadd.f32 0.0, %v901
        %903 = vmatmul.f32.gmra.mxu0 %v593
        %v904 = vpop.f32.mrf.mxu0
        %v905 = vadd.f32 0.0, %v904
        %906 = vdwg.mxu0
        %v907 = vsub.f32 %v902, %v832
        %v908 = vsub.f32 %v905, %v833
        %v909 = vmul.f32 %v832, 2.0
        %v910 = vmul.f32 %v833, 2.0
        %v911 = vadd.f32 %v909, 0.0001
        %v912 = vadd.f32 %v910, 0.0001
        %v913 = vmul.f32 %v907, 2.0
        %v914 = vmul.f32 %v908, 2.0
        %v915 = vadd.f32 %v913, 0.0009
        %v916 = vadd.f32 %v914, 0.0009
        %v917 = vmul.f32 %v911, %v915
        %v918 = vmul.f32 %v912, %v916
        %v919 = vadd.f32 %v828, %v830
        %v920 = vadd.f32 %v829, %v831
        %v921 = vadd.f32 %v919, 0.0001
        %v922 = vadd.f32 %v920, 0.0001
        %v923 = vadd.f32 %v857, %v882
        %v924 = vadd.f32 %v858, %v883
        %v925 = vadd.f32 %v923, 0.0009
        %v926 = vadd.f32 %v924, 0.0009
        %v927 = vmul.f32 %v921, %v925
        %v928 = vmul.f32 %v922, %v926
        %v929 = vrcp.pop %v927
        %v930 = vmul.f32 %v927, %v929
        %v931 = vsub.f32 1.0, %v930
        %v932 = vmul.f32 %v929, %v931
        %v933 = vadd.f32 %v929, %v932
        %vm934 = vweird.f32 %v927
        %vm935 = vweird.f32 %v929
        %vm936 = vmor %vm934, %vm935
        %v937 = vsel %vm936, %v929, %v933
        %v938 = vand.u32 2147483647, %v927
        %vm939 = vcmp.eq.f32.partialorder %v938, 8.507059e+37
        %v940 = vand.u32 %v927, 2147483648
        %v941 = vor.u32 1.1754944e-38, %v940
        %v942 = vsel %vm939, %v941, %v937
        %v943 = vmul.f32 %v917, %v942
        %v944 = vrcp.pop %v928
        %v945 = vmul.f32 %v928, %v944
        %v946 = vsub.f32 1.0, %v945
        %v947 = vmul.f32 %v944, %v946
        %v948 = vadd.f32 %v944, %v947
        %vm949 = vweird.f32 %v928
        %vm950 = vweird.f32 %v944
        %vm951 = vmor %vm949, %vm950
        %v952 = vsel %vm951, %v944, %v948
        %v953 = vand.u32 2147483647, %v928
        %vm954 = vcmp.eq.f32.partialorder %v953, 8.507059e+37
        %v955 = vand.u32 %v928, 2147483648
        %v956 = vor.u32 1.1754944e-38, %v955
        %v957 = vsel %vm954, %v956, %v952
        %v958 = vmul.f32 %v918, %v957
        %v959 = vsel %vm239, %v943, 0.0
        %v960 = vsel %vm239, %v958, 0.0
        %v961 = vadd.f32 %v959, %v960
        %v962 = vrot.slane %v961, 4
        %v963 = vadd.f32 %v961, %v962
        %v964 = vrot.slane %v963, 2
        %v965 = vadd.f32 %v963, %v964
        %v966 = vrot.slane %v965, 1
        %v967 = vadd.f32 %v965, %v966
        %v968 = vadd.f32 %v781, %v967
        %969 = vmatpush.msra.mxu0 0.0
        %970 = vmatpush.msra.mxu0 0.0
        %971 = vmatpush.msra.mxu0 0.0
        %972 = vmatpush.msra.mxu0 0.0
        %973 = vmatpush.msra.mxu0 0.0
        %974 = vmatpush.msra.mxu0 0.0
        %975 = vmatpush.msra.mxu0 0.0
        %976 = vmatpush.msra.mxu0 0.0
        %977 = vmatpush.msra.mxu0 0.0
        %978 = vmatpush.msra.mxu0 0.0
        %979 = vmatpush.msra.mxu0 0.0
        %980 = vmatpush.msra.mxu0 0.0
        %981 = vmatpush.msra.mxu0 0.0
        %982 = vmatpush.msra.mxu0 0.0
        %983 = vmatpush.msra.mxu0 %v297
        %984 = vmatpush.msra.mxu0 %v294
        %985 = vmatmul.f32.gmra.mxu0 %v590
        %v986 = vpop.f32.mrf.mxu0
        %v987 = vadd.f32 0.0, %v986
        %988 = vmatmul.f32.gmra.mxu0 %v593
        %v989 = vpop.f32.mrf.mxu0
        %v990 = vadd.f32 0.0, %v989
        %991 = vdwg.mxu0
        %992 = vmatpush.msra.mxu0 0.0
        %993 = vmatpush.msra.mxu0 0.0
        %994 = vmatpush.msra.mxu0 0.0
        %995 = vmatpush.msra.mxu0 0.0
        %996 = vmatpush.msra.mxu0 0.0
        %997 = vmatpush.msra.mxu0 0.0
        %998 = vmatpush.msra.mxu0 0.0
        %999 = vmatpush.msra.mxu0 0.0
        %1000 = vmatpush.msra.mxu0 0.0
        %1001 = vmatpush.msra.mxu0 0.0
        %1002 = vmatpush.msra.mxu0 0.0
        %1003 = vmatpush.msra.mxu0 0.0
        %1004 = vmatpush.msra.mxu0 0.0
        %1005 = vmatpush.msra.mxu0 0.0
        %1006 = vmatpush.msra.mxu0 %v362
        %1007 = vmatpush.msra.mxu0 %v359
        %1008 = vmatmul.f32.gmra.mxu0 %v590
        %v1009 = vpop.f32.mrf.mxu0
        %v1010 = vadd.f32 0.0, %v1009
        %1011 = vmatmul.f32.gmra.mxu0 %v593
        %v1012 = vpop.f32.mrf.mxu0
        %v1013 = vadd.f32 0.0, %v1012
        %1014 = vdwg.mxu0
        %v1015 = vmul.f32 %v987, %v987
        %v1016 = vmul.f32 %v990, %v990
        %v1017 = vmul.f32 %v1010, %v1010
        %v1018 = vmul.f32 %v1013, %v1013
        %v1019 = vmul.f32 %v987, %v1010
        %v1020 = vmul.f32 %v990, %v1013
        %1021 = vmatpush.msra.mxu0 0.0
        %1022 = vmatpush.msra.mxu0 0.0
        %1023 = vmatpush.msra.mxu0 0.0
        %1024 = vmatpush.msra.mxu0 0.0
        %1025 = vmatpush.msra.mxu0 0.0
        %1026 = vmatpush.msra.mxu0 0.0
        %1027 = vmatpush.msra.mxu0 0.0
        %1028 = vmatpush.msra.mxu0 0.0
        %1029 = vmatpush.msra.mxu0 0.0
        %1030 = vmatpush.msra.mxu0 0.0
        %1031 = vmatpush.msra.mxu0 0.0
        %1032 = vmatpush.msra.mxu0 0.0
        %1033 = vmatpush.msra.mxu0 0.0
        %1034 = vmatpush.msra.mxu0 0.0
        %1035 = vmatpush.msra.mxu0 %v435
        %1036 = vmatpush.msra.mxu0 %v432
        %1037 = vmatmul.f32.gmra.mxu0 %v590
        %v1038 = vpop.f32.mrf.mxu0
        %v1039 = vadd.f32 0.0, %v1038
        %1040 = vmatmul.f32.gmra.mxu0 %v593
        %v1041 = vpop.f32.mrf.mxu0
        %v1042 = vadd.f32 0.0, %v1041
        %1043 = vdwg.mxu0
        %v1044 = vsub.f32 %v1039, %v1015
        %v1045 = vsub.f32 %v1042, %v1016
        %1046 = vmatpush.msra.mxu0 0.0
        %1047 = vmatpush.msra.mxu0 0.0
        %1048 = vmatpush.msra.mxu0 0.0
        %1049 = vmatpush.msra.mxu0 0.0
        %1050 = vmatpush.msra.mxu0 0.0
        %1051 = vmatpush.msra.mxu0 0.0
        %1052 = vmatpush.msra.mxu0 0.0
        %1053 = vmatpush.msra.mxu0 0.0
        %1054 = vmatpush.msra.mxu0 0.0
        %1055 = vmatpush.msra.mxu0 0.0
        %1056 = vmatpush.msra.mxu0 0.0
        %1057 = vmatpush.msra.mxu0 0.0
        %1058 = vmatpush.msra.mxu0 0.0
        %1059 = vmatpush.msra.mxu0 0.0
        %1060 = vmatpush.msra.mxu0 %v508
        %1061 = vmatpush.msra.mxu0 %v505
        %1062 = vmatmul.f32.gmra.mxu0 %v590
        %v1063 = vpop.f32.mrf.mxu0
        %v1064 = vadd.f32 0.0, %v1063
        %1065 = vmatmul.f32.gmra.mxu0 %v593
        %v1066 = vpop.f32.mrf.mxu0
        %v1067 = vadd.f32 0.0, %v1066
        %1068 = vdwg.mxu0
        %v1069 = vsub.f32 %v1064, %v1017
        %v1070 = vsub.f32 %v1067, %v1018
        %1071 = vmatpush.msra.mxu0 0.0
        %1072 = vmatpush.msra.mxu0 0.0
        %1073 = vmatpush.msra.mxu0 0.0
        %1074 = vmatpush.msra.mxu0 0.0
        %1075 = vmatpush.msra.mxu0 0.0
        %1076 = vmatpush.msra.mxu0 0.0
        %1077 = vmatpush.msra.mxu0 0.0
        %1078 = vmatpush.msra.mxu0 0.0
        %1079 = vmatpush.msra.mxu0 0.0
        %1080 = vmatpush.msra.mxu0 0.0
        %1081 = vmatpush.msra.mxu0 0.0
        %1082 = vmatpush.msra.mxu0 0.0
        %1083 = vmatpush.msra.mxu0 0.0
        %1084 = vmatpush.msra.mxu0 0.0
        %1085 = vmatpush.msra.mxu0 %v581
        %1086 = vmatpush.msra.mxu0 %v578
        %1087 = vmatmul.f32.gmra.mxu0 %v590
        %v1088 = vpop.f32.mrf.mxu0
        %v1089 = vadd.f32 0.0, %v1088
        %1090 = vmatmul.f32.gmra.mxu0 %v593
        %v1091 = vpop.f32.mrf.mxu0
        %v1092 = vadd.f32 0.0, %v1091
        %1093 = vdwg.mxu0
        %v1094 = vsub.f32 %v1089, %v1019
        %v1095 = vsub.f32 %v1092, %v1020
        %v1096 = vmul.f32 %v1019, 2.0
        %v1097 = vmul.f32 %v1020, 2.0
        %v1098 = vadd.f32 %v1096, 0.0001
        %v1099 = vadd.f32 %v1097, 0.0001
        %v1100 = vmul.f32 %v1094, 2.0
        %v1101 = vmul.f32 %v1095, 2.0
        %v1102 = vadd.f32 %v1100, 0.0009
        %v1103 = vadd.f32 %v1101, 0.0009
        %v1104 = vmul.f32 %v1098, %v1102
        %v1105 = vmul.f32 %v1099, %v1103
        %v1106 = vadd.f32 %v1015, %v1017
        %v1107 = vadd.f32 %v1016, %v1018
        %v1108 = vadd.f32 %v1106, 0.0001
        %v1109 = vadd.f32 %v1107, 0.0001
        %v1110 = vadd.f32 %v1044, %v1069
        %v1111 = vadd.f32 %v1045, %v1070
        %v1112 = vadd.f32 %v1110, 0.0009
        %v1113 = vadd.f32 %v1111, 0.0009
        %v1114 = vmul.f32 %v1108, %v1112
        %v1115 = vmul.f32 %v1109, %v1113
        %v1116 = vrcp.pop %v1114
        %v1117 = vmul.f32 %v1114, %v1116
        %v1118 = vsub.f32 1.0, %v1117
        %v1119 = vmul.f32 %v1116, %v1118
        %v1120 = vadd.f32 %v1116, %v1119
        %vm1121 = vweird.f32 %v1114
        %vm1122 = vweird.f32 %v1116
        %vm1123 = vmor %vm1121, %vm1122
        %v1124 = vsel %vm1123, %v1116, %v1120
        %v1125 = vand.u32 2147483647, %v1114
        %vm1126 = vcmp.eq.f32.partialorder %v1125, 8.507059e+37
        %v1127 = vand.u32 %v1114, 2147483648
        %v1128 = vor.u32 1.1754944e-38, %v1127
        %v1129 = vsel %vm1126, %v1128, %v1124
        %v1130 = vmul.f32 %v1104, %v1129
        %v1131 = vrcp.pop %v1115
        %v1132 = vmul.f32 %v1115, %v1131
        %v1133 = vsub.f32 1.0, %v1132
        %v1134 = vmul.f32 %v1131, %v1133
        %v1135 = vadd.f32 %v1131, %v1134
        %vm1136 = vweird.f32 %v1115
        %vm1137 = vweird.f32 %v1131
        %vm1138 = vmor %vm1136, %vm1137
        %v1139 = vsel %vm1138, %v1131, %v1135
        %v1140 = vand.u32 2147483647, %v1115
        %vm1141 = vcmp.eq.f32.partialorder %v1140, 8.507059e+37
        %v1142 = vand.u32 %v1115, 2147483648
        %v1143 = vor.u32 1.1754944e-38, %v1142
        %v1144 = vsel %vm1141, %v1143, %v1139
        %v1145 = vmul.f32 %v1105, %v1144
        %v1146 = vsel %vm239, %v1130, 0.0
        %v1147 = vsel %vm239, %v1145, 0.0
        %v1148 = vadd.f32 %v1146, %v1147
        %v1149 = vrot.slane %v1148, 4
        %v1150 = vadd.f32 %v1148, %v1149
        %v1151 = vrot.slane %v1150, 2
        %v1152 = vadd.f32 %v1150, %v1151
        %v1153 = vrot.slane %v1152, 1
        %v1154 = vadd.f32 %v1152, %v1153
        %v1155 = vadd.f32 %v968, %v1154
        %1156 = vmatpush.msra.mxu0 0.0
        %1157 = vmatpush.msra.mxu0 0.0
        %1158 = vmatpush.msra.mxu0 0.0
        %1159 = vmatpush.msra.mxu0 0.0
        %1160 = vmatpush.msra.mxu0 0.0
        %1161 = vmatpush.msra.mxu0 0.0
        %1162 = vmatpush.msra.mxu0 0.0
        %1163 = vmatpush.msra.mxu0 0.0
        %1164 = vmatpush.msra.mxu0 0.0
        %1165 = vmatpush.msra.mxu0 0.0
        %1166 = vmatpush.msra.mxu0 0.0
        %1167 = vmatpush.msra.mxu0 0.0
        %1168 = vmatpush.msra.mxu0 0.0
        %1169 = vmatpush.msra.mxu0 0.0
        %1170 = vmatpush.msra.mxu0 %v303
        %1171 = vmatpush.msra.mxu0 %v300
        %1172 = vmatmul.f32.gmra.mxu0 %v590
        %v1173 = vpop.f32.mrf.mxu0
        %v1174 = vadd.f32 0.0, %v1173
        %1175 = vmatmul.f32.gmra.mxu0 %v593
        %v1176 = vpop.f32.mrf.mxu0
        %v1177 = vadd.f32 0.0, %v1176
        %1178 = vdwg.mxu0
        %1179 = vmatpush.msra.mxu0 0.0
        %1180 = vmatpush.msra.mxu0 0.0
        %1181 = vmatpush.msra.mxu0 0.0
        %1182 = vmatpush.msra.mxu0 0.0
        %1183 = vmatpush.msra.mxu0 0.0
        %1184 = vmatpush.msra.mxu0 0.0
        %1185 = vmatpush.msra.mxu0 0.0
        %1186 = vmatpush.msra.mxu0 0.0
        %1187 = vmatpush.msra.mxu0 0.0
        %1188 = vmatpush.msra.mxu0 0.0
        %1189 = vmatpush.msra.mxu0 0.0
        %1190 = vmatpush.msra.mxu0 0.0
        %1191 = vmatpush.msra.mxu0 0.0
        %1192 = vmatpush.msra.mxu0 0.0
        %1193 = vmatpush.msra.mxu0 %v368
        %1194 = vmatpush.msra.mxu0 %v365
        %1195 = vmatmul.f32.gmra.mxu0 %v590
        %v1196 = vpop.f32.mrf.mxu0
        %v1197 = vadd.f32 0.0, %v1196
        %1198 = vmatmul.f32.gmra.mxu0 %v593
        %v1199 = vpop.f32.mrf.mxu0
        %v1200 = vadd.f32 0.0, %v1199
        %1201 = vdwg.mxu0
        %v1202 = vmul.f32 %v1174, %v1174
        %v1203 = vmul.f32 %v1177, %v1177
        %v1204 = vmul.f32 %v1197, %v1197
        %v1205 = vmul.f32 %v1200, %v1200
        %v1206 = vmul.f32 %v1174, %v1197
        %v1207 = vmul.f32 %v1177, %v1200
        %1208 = vmatpush.msra.mxu0 0.0
        %1209 = vmatpush.msra.mxu0 0.0
        %1210 = vmatpush.msra.mxu0 0.0
        %1211 = vmatpush.msra.mxu0 0.0
        %1212 = vmatpush.msra.mxu0 0.0
        %1213 = vmatpush.msra.mxu0 0.0
        %1214 = vmatpush.msra.mxu0 0.0
        %1215 = vmatpush.msra.mxu0 0.0
        %1216 = vmatpush.msra.mxu0 0.0
        %1217 = vmatpush.msra.mxu0 0.0
        %1218 = vmatpush.msra.mxu0 0.0
        %1219 = vmatpush.msra.mxu0 0.0
        %1220 = vmatpush.msra.mxu0 0.0
        %1221 = vmatpush.msra.mxu0 0.0
        %1222 = vmatpush.msra.mxu0 %v441
        %1223 = vmatpush.msra.mxu0 %v438
        %1224 = vmatmul.f32.gmra.mxu0 %v590
        %v1225 = vpop.f32.mrf.mxu0
        %v1226 = vadd.f32 0.0, %v1225
        %1227 = vmatmul.f32.gmra.mxu0 %v593
        %v1228 = vpop.f32.mrf.mxu0
        %v1229 = vadd.f32 0.0, %v1228
        %1230 = vdwg.mxu0
        %v1231 = vsub.f32 %v1226, %v1202
        %v1232 = vsub.f32 %v1229, %v1203
        %1233 = vmatpush.msra.mxu0 0.0
        %1234 = vmatpush.msra.mxu0 0.0
        %1235 = vmatpush.msra.mxu0 0.0
        %1236 = vmatpush.msra.mxu0 0.0
        %1237 = vmatpush.msra.mxu0 0.0
        %1238 = vmatpush.msra.mxu0 0.0
        %1239 = vmatpush.msra.mxu0 0.0
        %1240 = vmatpush.msra.mxu0 0.0
        %1241 = vmatpush.msra.mxu0 0.0
        %1242 = vmatpush.msra.mxu0 0.0
        %1243 = vmatpush.msra.mxu0 0.0
        %1244 = vmatpush.msra.mxu0 0.0
        %1245 = vmatpush.msra.mxu0 0.0
        %1246 = vmatpush.msra.mxu0 0.0
        %1247 = vmatpush.msra.mxu0 %v514
        %1248 = vmatpush.msra.mxu0 %v511
        %1249 = vmatmul.f32.gmra.mxu0 %v590
        %v1250 = vpop.f32.mrf.mxu0
        %v1251 = vadd.f32 0.0, %v1250
        %1252 = vmatmul.f32.gmra.mxu0 %v593
        %v1253 = vpop.f32.mrf.mxu0
        %v1254 = vadd.f32 0.0, %v1253
        %1255 = vdwg.mxu0
        %v1256 = vsub.f32 %v1251, %v1204
        %v1257 = vsub.f32 %v1254, %v1205
        %1258 = vmatpush.msra.mxu0 0.0
        %1259 = vmatpush.msra.mxu0 0.0
        %1260 = vmatpush.msra.mxu0 0.0
        %1261 = vmatpush.msra.mxu0 0.0
        %1262 = vmatpush.msra.mxu0 0.0
        %1263 = vmatpush.msra.mxu0 0.0
        %1264 = vmatpush.msra.mxu0 0.0
        %1265 = vmatpush.msra.mxu0 0.0
        %1266 = vmatpush.msra.mxu0 0.0
        %1267 = vmatpush.msra.mxu0 0.0
        %1268 = vmatpush.msra.mxu0 0.0
        %1269 = vmatpush.msra.mxu0 0.0
        %1270 = vmatpush.msra.mxu0 0.0
        %1271 = vmatpush.msra.mxu0 0.0
        %1272 = vmatpush.msra.mxu0 %v587
        %1273 = vmatpush.msra.mxu0 %v584
        %1274 = vmatmul.f32.gmra.mxu0 %v590
        %v1275 = vpop.f32.mrf.mxu0
        %v1276 = vadd.f32 0.0, %v1275
        %1277 = vmatmul.f32.gmra.mxu0 %v593
        %v1278 = vpop.f32.mrf.mxu0
        %v1279 = vadd.f32 0.0, %v1278
        %1280 = vdwg.mxu0
        %v1281 = vsub.f32 %v1276, %v1206
        %v1282 = vsub.f32 %v1279, %v1207
        %v1283 = vmul.f32 %v1206, 2.0
        %v1284 = vmul.f32 %v1207, 2.0
        %v1285 = vadd.f32 %v1283, 0.0001
        %v1286 = vadd.f32 %v1284, 0.0001
        %v1287 = vmul.f32 %v1281, 2.0
        %v1288 = vmul.f32 %v1282, 2.0
        %v1289 = vadd.f32 %v1287, 0.0009
        %v1290 = vadd.f32 %v1288, 0.0009
        %v1291 = vmul.f32 %v1285, %v1289
        %v1292 = vmul.f32 %v1286, %v1290
        %v1293 = vadd.f32 %v1202, %v1204
        %v1294 = vadd.f32 %v1203, %v1205
        %v1295 = vadd.f32 %v1293, 0.0001
        %v1296 = vadd.f32 %v1294, 0.0001
        %v1297 = vadd.f32 %v1231, %v1256
        %v1298 = vadd.f32 %v1232, %v1257
        %v1299 = vadd.f32 %v1297, 0.0009
        %v1300 = vadd.f32 %v1298, 0.0009
        %v1301 = vmul.f32 %v1295, %v1299
        %v1302 = vmul.f32 %v1296, %v1300
        %v1303 = vrcp.pop %v1301
        %v1304 = vmul.f32 %v1301, %v1303
        %v1305 = vsub.f32 1.0, %v1304
        %v1306 = vmul.f32 %v1303, %v1305
        %v1307 = vadd.f32 %v1303, %v1306
        %vm1308 = vweird.f32 %v1301
        %vm1309 = vweird.f32 %v1303
        %vm1310 = vmor %vm1308, %vm1309
        %v1311 = vsel %vm1310, %v1303, %v1307
        %v1312 = vand.u32 2147483647, %v1301
        %vm1313 = vcmp.eq.f32.partialorder %v1312, 8.507059e+37
        %v1314 = vand.u32 %v1301, 2147483648
        %v1315 = vor.u32 1.1754944e-38, %v1314
        %v1316 = vsel %vm1313, %v1315, %v1311
        %v1317 = vmul.f32 %v1291, %v1316
        %v1318 = vrcp.pop %v1302
        %v1319 = vmul.f32 %v1302, %v1318
        %v1320 = vsub.f32 1.0, %v1319
        %v1321 = vmul.f32 %v1318, %v1320
        %v1322 = vadd.f32 %v1318, %v1321
        %vm1323 = vweird.f32 %v1302
        %vm1324 = vweird.f32 %v1318
        %vm1325 = vmor %vm1323, %vm1324
        %v1326 = vsel %vm1325, %v1318, %v1322
        %v1327 = vand.u32 2147483647, %v1302
        %vm1328 = vcmp.eq.f32.partialorder %v1327, 8.507059e+37
        %v1329 = vand.u32 %v1302, 2147483648
        %v1330 = vor.u32 1.1754944e-38, %v1329
        %v1331 = vsel %vm1328, %v1330, %v1326
        %v1332 = vmul.f32 %v1292, %v1331
        %v1333 = vsel %vm239, %v1317, 0.0
        %v1334 = vsel %vm239, %v1332, 0.0
        %v1335 = vadd.f32 %v1333, %v1334
        %v1336 = vrot.slane %v1335, 4
        %v1337 = vadd.f32 %v1335, %v1336
        %v1338 = vrot.slane %v1337, 2
        %v1339 = vadd.f32 %v1337, %v1338
        %v1340 = vrot.slane %v1339, 1
        %v1341 = vadd.f32 %v1339, %v1340
        %v1342 = vadd.f32 %v1155, %v1341
        %vm1343 = vcmask 122880
        %1344 = vst.msk [vmem:[%s206] sm:$0x1] %vm1343, %v1342
        %s1345 = sand.u32 %s120, 1
        %s1346 = scalar_lea.sflag [#allocation3], %s1345
        %s1347 = sand.u32 %s120, 1
        %s1348 = scalar_lea.vmem [#allocation2], %s1347
        // Predicated region
        $region37: #{tpu_custom_call.1} parent=35 // pred_check
          %p1349 = pneg %p130
        $region38: #{tpu_custom_call.1} parent=35 // pred_check_branch
          %1351 = sbr.rel (%p1349) target = $region40
        $region39: #{tpu_custom_call.1} parent=35 // pred_region
          %1353 = vsyncadd %s1346, 0
          %s1354 = scalar_lea.hbm %s4, %s18
          %s1356 = sshll.u32 %s1348, 4
          %s1357 = int_to_ptr.vmem [resolvable:$true] %s1356
          %s1358 = sshll.u32 %s1354, 4
          %s1359 = int_to_ptr.hbm [resolvable:$true] %s1358
          %1361 = dma.vmem_to_hbm [thread:$0]  %s1357, 16, %s1359, %s1346
        $region40: #{tpu_custom_call.1} parent=35 // pred_fallthru
          _
      $region36: #{tpu_custom_call.1} parent=5 // pred_fallthru
        _
      %p1362 = scmp.le.s32.totalorder 2, %s13
      // Predicated region
      $region41: #{tpu_custom_call.1} parent=5 // pred_check
        %p1363 = pneg %p1362
      $region42: #{tpu_custom_call.1} parent=5 // pred_check_branch
        %1365 = sbr.rel (%p1363) target = $region44
      $region43: #{tpu_custom_call.1} parent=5 // pred_region
        %s1366 = ssub.s32 %s13, 2
        // Predicated region
        $region45: #{tpu_custom_call.1} parent=43 // pred_check
          %p1367 = pneg %p136
        $region46: #{tpu_custom_call.1} parent=43 // pred_check_branch
          %1369 = sbr.rel (%p1367) target = $region48
        $region47: #{tpu_custom_call.1} parent=43 // pred_region
          %s1370 = sand.u32 %s121, 1
          %s1371 = scalar_lea.sflag [#allocation3], %s1370
          %s1372 = sand.u32 %s121, 1
          %s1373 = scalar_lea.vmem [#allocation2], %s1372
          %1375 = dma.done %s1371, 16
        $region48: #{tpu_custom_call.1} parent=43 // pred_fallthru
          _
      $region44: #{tpu_custom_call.1} parent=5 // pred_fallthru
        _
    $region6: #{tpu_custom_call.1} parent=1 // loop_footer
      %s17 = sadd.s32 1, %s13
    $region7: #{tpu_custom_call.1} parent=1 // loop_footer_branch
      %12 = sbr.rel target = $region3
    $region8: #{tpu_custom_call.1} parent=1 // loop_exit
      _
    %1376 = vsyncpa [#allocation3], 1
    %s1377 = scalar_lea.sflag [#allocation3], 1
    %1378 = vsyncpa %s1377, 1

</llo_original>
